<compile_context>
chip_gen: v6e
topology: v6e:2x2x1
jax: 0.10.0
libtpu: 0.0.40
codegen_flags: <defaults>
</compile_context>

<pallas_src>
import functools

import jax
import jax.numpy as jnp
from jax import lax
from jax.experimental import pallas as pl
from jax.experimental.pallas import tpu as pltpu

M_MARGIN = 0.35
GAMMA = 96.0
EPS = 1e-9

# Fixed analytic shift: supremum of the circle-loss logits for sim <= 1.
#   pos(s) = G*(s-(1-m))*((1+m)-s) = 2*G*s - G*s^2 - G*(1-m^2)   (max G*m^2 at s=1)
#   neg(s) = G*(s-m)*relu(s+m)     = G*s^2 - G*m^2 if s > -m else 0  (max G*(1-m^2))
_SHIFT_C = GAMMA * (1.0 - M_MARGIN * M_MARGIN)      # ~84.24
_POS_CONST = 2.0 * _SHIFT_C                          # pos - C = 2*G*s - G*s^2 - 2*C
_NEG_CONST = GAMMA * M_MARGIN * M_MARGIN + _SHIFT_C  # neg - C = G*s^2 - (G*m^2 + C)


def _circle_loss_kernel(n_ref, xr_ref, xc_ref, tcol_ref, trow_ref, out_ref,
                        pos_acc, tot_acc, *, mask_cols):
    # n_ref    : (1,) int32 in SMEM — true (unpadded) N
    # xr_ref   : (TM, D) L2-normalized row-block features
    # xc_ref   : (TN, D) L2-normalized column-block features
    # tcol_ref : (TM, 1) int32 row-block labels
    # trow_ref : (1, TN) int32 column-block labels
    # out_ref  : (TM, 1) per-row loss term, written on the last column step
    # scratch  : pos_acc / tot_acc (TM, 1) f32 accumulators
    k = pl.program_id(1)
    nk = pl.num_programs(1)

    @pl.when(k == 0)
    def _init():
        pos_acc[...] = jnp.zeros_like(pos_acc)
        tot_acc[...] = jnp.zeros_like(tot_acc)

    # Similarity tile (TM, TN): contract the feature dim on the MXU, f32 acc,
    # explicit HIGHEST precision so the f32 path can't silently regress.
    sim = lax.dot_general(
        xr_ref[...], xc_ref[...],
        dimension_numbers=(((1,), (1,)), ((), ())),
        preferred_element_type=jnp.float32,
        precision=lax.Precision.HIGHEST,
    )

    # Boolean same-class mask for this tile: (TM,1) == (1,TN) -> (TM,TN).
    mb = tcol_ref[...] == trow_ref[...]

    # Shared-quadratic, constant-folded, shift-folded logits.
    gsim = GAMMA * sim
    gs2 = gsim * sim
    pos_s = (gsim + gsim) - gs2 - _POS_CONST
    neg_s = jnp.where(sim > -M_MARGIN, gs2 - _NEG_CONST, -_SHIFT_C)
    simi = jnp.where(mb, pos_s, neg_s)

    e = jnp.exp(simi)

    if mask_cols:
        # Padded columns (global column index >= true N) contribute 0.
        tn = e.shape[1]
        col = k * tn + lax.broadcasted_iota(jnp.int32, (1, tn), 1)
        e = jnp.where(col < n_ref[0], e, 0.0)

    pos_acc[...] += jnp.sum(jnp.where(mb, e, 0.0), axis=1, keepdims=True)
    tot_acc[...] += jnp.sum(e, axis=1, keepdims=True)

    # Finalize: log(1 + neg/pos) == log(total) - log(pos); the shift C cancels.
    @pl.when(k == nk - 1)
    def _fin():
        out_ref[...] = jnp.log(tot_acc[...]) - jnp.log(pos_acc[...])


def _vmem_limit_bytes(tm, tn, d):
    """Size the VMEM limit from the actual footprint (clamped 16..48 MiB)."""
    blocks = 2 * 4 * (tm * d + tn * d + tm + tn + tm)   # double-buffered blocks
    scratch = 2 * 4 * tm                                # pos/tot accumulators
    temps = 8 * 4 * tm * tn                             # (TM,TN) f32 temporaries
    limit = blocks + scratch + temps + (4 << 20)        # + headroom
    return int(min(max(limit, 16 << 20), 48 << 20))


def circle_loss_sun(inputs, targets, *, tm=None, tn=None):
    """JAX/Pallas equivalent of CircleLossSun.forward(inputs, targets)."""
    n, d = inputs.shape
    x = inputs.astype(jnp.float32)

    # Hoisted L2 normalization: one O(N*D) XLA op instead of per-grid-step work.
    feat = x * lax.rsqrt(jnp.sum(x * x, axis=1, keepdims=True) + EPS)

    # Pad N up to a multiple of 128 so row/column tiles stay (8,128)-aligned
    # (no tm=8 fallback).  Padded rows are zero features / dummy labels; padded
    # columns are masked out inside the kernel; padded rows are sliced off
    # before the mean.
    n_pad = -(-n // 128) * 128
    pad = n_pad - n
    tgt = targets.astype(jnp.int32)
    if pad:
        feat = jnp.pad(feat, ((0, pad), (0, 0)))
        tgt = jnp.pad(tgt, (0, pad))

    t_col = tgt.reshape(n_pad, 1)
    t_row = tgt.reshape(1, n_pad)

    # Row tile: 128 keeps grid[0] >= 2 for N >= 256 (v7x megacore sharding).
    if tm is None:
        tm = 128
    # Column tile: as wide as divides n_pad, but keep the double-buffered
    # column block modest before the VMEM limit has to grow (v7x: 64 MiB).
    if tn is None:
        tn = 512 if n_pad % 512 == 0 else (256 if n_pad % 256 == 0 else 128)
        while tn > 128 and 2 * 4 * tn * d > (8 << 20):
            tn //= 2
    assert n_pad % tm == 0 and n_pad % tn == 0, (n, n_pad, tm, tn)

    grid = (n_pad // tm, n_pad // tn)
    n_true = jnp.array([n], dtype=jnp.int32)

    kernel = functools.partial(_circle_loss_kernel, mask_cols=pad > 0)

    per_row = pl.pallas_call(
        kernel,
        out_shape=jax.ShapeDtypeStruct((n_pad, 1), jnp.float32),
        grid_spec=pltpu.PrefetchScalarGridSpec(
            num_scalar_prefetch=1,
            grid=grid,
            in_specs=[
                pl.BlockSpec((tm, d), lambda i, k, n_ref: (i, 0)),   # row feats
                pl.BlockSpec((tn, d), lambda i, k, n_ref: (k, 0)),   # col feats
                pl.BlockSpec((tm, 1), lambda i, k, n_ref: (i, 0)),   # row labels
                pl.BlockSpec((1, tn), lambda i, k, n_ref: (0, k)),   # col labels
            ],
            out_specs=pl.BlockSpec((tm, 1), lambda i, k, n_ref: (i, 0)),
            scratch_shapes=[
                pltpu.VMEM((tm, 1), jnp.float32),  # positive-sum accumulator
                pltpu.VMEM((tm, 1), jnp.float32),  # total-sum accumulator
            ],
        ),
        compiler_params=pltpu.CompilerParams(
            dimension_semantics=("parallel", "arbitrary"),
            vmem_limit_bytes=_vmem_limit_bytes(tm, tn, d),
        ),
    )(n_true, feat, feat, t_col, t_row)

    # O(N) epilogue: drop padded rows, mean over real rows.
    return jnp.mean(per_row[:n, 0])


def circle_loss_sun_ref(inputs, targets):
    """Pure-JAX reference mirroring the PyTorch module line-by-line."""
    x = inputs.astype(jnp.float32)
    feat = x / jnp.sqrt(jnp.sum(x * x, axis=1, keepdims=True) + EPS)
    sim = jnp.matmul(feat, feat.T, precision=lax.Precision.HIGHEST)
    n = targets.shape[0]
    mask = (targets.reshape(n, 1) == targets.reshape(1, n)).astype(jnp.float32)
    pos_scale = GAMMA * (1.0 + M_MARGIN - sim)
    neg_scale = GAMMA * jnp.maximum(sim + M_MARGIN, 0.0)
    scale_matrix = pos_scale * mask + neg_scale * (1.0 - mask)
    simi = (sim - mask * (1.0 - M_MARGIN) - (1.0 - mask) * M_MARGIN) * scale_matrix
    neg_sim_sum = jnp.sum(jnp.exp(simi) * (1.0 - mask), axis=1)
    pos_sim_sum = jnp.sum(jnp.exp(simi) * mask, axis=1)
    return jnp.mean(jnp.log(1.0 + neg_sim_sum / pos_sim_sum))


if __name__ == "__main__":
    key = jax.random.PRNGKey(0)
    k1, k2, k3, k4 = jax.random.split(key, 4)

    # Config 1: 128-aligned re-id style batch. tm=tn=128 -> (2, 2) grid,
    # exercises the parallel row axis and a multi-step column reduction.
    n1, d1 = 256, 64
    x1 = jax.random.normal(k1, (n1, d1), dtype=jnp.float32)
    t1 = jax.random.randint(k2, (n1,), 0, 16, dtype=jnp.int32)
    loss1 = jax.block_until_ready(circle_loss_sun(x1, t1, tm=128, tn=128))
    ref1 = jax.block_until_ready(circle_loss_sun_ref(x1, t1))
    assert jnp.isfinite(loss1), "loss1 is not finite"
    # GAMMA=96 amplifies matmul rounding inside exp(); 1e-4 is tight given that.
    assert jnp.allclose(loss1, ref1, rtol=1e-4, atol=1e-4), (loss1, ref1)

    # Config 2: awkward (non-128-multiple) batch -> padded to 128, padded
    # columns masked in-kernel, padded rows sliced off before the mean.
    n2, d2 = 40, 48
    x2 = jax.random.normal(k3, (n2, d2), dtype=jnp.float32)
    t2 = jax.random.randint(k4, (n2,), 0, 5, dtype=jnp.int32)
    loss2 = jax.block_until_ready(circle_loss_sun(x2, t2))
    ref2 = jax.block_until_ready(circle_loss_sun_ref(x2, t2))
    assert jnp.isfinite(loss2), "loss2 is not finite"
    assert jnp.allclose(loss2, ref2, rtol=1e-4, atol=1e-4), (loss2, ref2)

    print("KERNEL_OK")
</pallas_src>

<mosaic_0001>
module attributes {stable_mosaic.version = 11 : i64} {
  func.func @_circle_loss_kernel(%arg0: i32, %arg1: i32, %arg2: memref<1xi32, #tpu.memory_space<smem>>, %arg3: memref<128x64xf32, #tpu.memory_space<vmem>>, %arg4: memref<128x64xf32, #tpu.memory_space<vmem>>, %arg5: memref<128x1xi32, #tpu.memory_space<vmem>>, %arg6: memref<1x128xi32, #tpu.memory_space<vmem>>, %arg7: memref<128x1xf32, #tpu.memory_space<vmem>>, %arg8: memref<128x1xf32, #tpu.memory_space<vmem>>, %arg9: memref<128x1xf32, #tpu.memory_space<vmem>>) attributes {dimension_semantics = [#tpu.dimension_semantics<parallel>, #tpu.dimension_semantics<arbitrary>], iteration_bounds = array<i64: 2, 2>, scalar_prefetch = 1 : i64, scratch_operands = 2 : i64, tpu.core_type = #tpu.core_type<tc>, window_params = [{transform_indices = @transform_0, window_bounds = array<i64: 128, 64>}, {transform_indices = @transform_1, window_bounds = array<i64: 128, 64>}, {transform_indices = @transform_2, window_bounds = array<i64: 128, 1>}, {transform_indices = @transform_3, window_bounds = array<i64: 1, 128>}, {transform_indices = @transform_4, window_bounds = array<i64: 128, 1>}]} {
    %c0_i32 = arith.constant 0 : i32
    %0 = arith.cmpi eq, %arg1, %c0_i32 : i32
    %1 = arith.extui %0 : i1 to i32
    %c0_i32_0 = arith.constant 0 : i32
    %2 = arith.cmpi ne, %1, %c0_i32_0 : i32
    scf.if %2 {
      %cst_25 = arith.constant 0.000000e+00 : f32
      %41 = vector.broadcast %cst_25 : f32 to vector<128x1xf32>
      %c0_26 = arith.constant 0 : index
      %c0_27 = arith.constant 0 : index
      %42 = vector.load %arg8[%c0_26, %c0_27] : memref<128x1xf32, #tpu.memory_space<vmem>>, vector<128x1xf32>
      tpu.vector_store %arg8[%c0_26, %c0_27], %41 {strides = array<i32>} : memref<128x1xf32, #tpu.memory_space<vmem>>, vector<128x1xf32>,
      %cst_28 = arith.constant 0.000000e+00 : f32
      %43 = vector.broadcast %cst_28 : f32 to vector<128x1xf32>
      %c0_29 = arith.constant 0 : index
      %c0_30 = arith.constant 0 : index
      %44 = vector.load %arg9[%c0_29, %c0_30] : memref<128x1xf32, #tpu.memory_space<vmem>>, vector<128x1xf32>
      tpu.vector_store %arg9[%c0_29, %c0_30], %43 {strides = array<i32>} : memref<128x1xf32, #tpu.memory_space<vmem>>, vector<128x1xf32>,
    } else {
    }
    %c0 = arith.constant 0 : index
    %c0_1 = arith.constant 0 : index
    %3 = vector.load %arg3[%c0, %c0_1] : memref<128x64xf32, #tpu.memory_space<vmem>>, vector<128x64xf32>
    %c0_2 = arith.constant 0 : index
    %c0_3 = arith.constant 0 : index
    %4 = vector.load %arg4[%c0_2, %c0_3] : memref<128x64xf32, #tpu.memory_space<vmem>>, vector<128x64xf32>
    %cst = arith.constant dense<0.000000e+00> : vector<128x128xf32>
    %5 = tpu.matmul %3, %4, %cst {dimension_numbers = #tpu.dot_dimension_numbers<[1], [1], [0], [0], [0, 0, 1, 0], [], []>, precision = #tpu.contract_precision<fp32>} : vector<128x64xf32>, vector<128x64xf32>, vector<128x128xf32> -> vector<128x128xf32>
    %c0_4 = arith.constant 0 : index
    %c0_5 = arith.constant 0 : index
    %6 = vector.load %arg5[%c0_4, %c0_5] : memref<128x1xi32, #tpu.memory_space<vmem>>, vector<128x1xi32>
    %c0_6 = arith.constant 0 : index
    %c0_7 = arith.constant 0 : index
    %7 = vector.load %arg6[%c0_6, %c0_7] : memref<1x128xi32, #tpu.memory_space<vmem>>, vector<1x128xi32>
    %8 = vector.broadcast %6 : vector<128x1xi32> to vector<128x128xi32>
    %9 = vector.broadcast %7 : vector<1x128xi32> to vector<128x128xi32>
    %10 = arith.cmpi eq, %8, %9 : vector<128x128xi32>
    %cst_8 = arith.constant 9.600000e+01 : f32
    %11 = vector.broadcast %cst_8 : f32 to vector<128x128xf32>
    %12 = arith.mulf %11, %5 : vector<128x128xf32>
    %13 = arith.mulf %12, %5 : vector<128x128xf32>
    %14 = arith.addf %12, %12 : vector<128x128xf32>
    %15 = arith.subf %14, %13 : vector<128x128xf32>
    %cst_9 = arith.constant 1.684800e+02 : f32
    %16 = vector.broadcast %cst_9 : f32 to vector<128x128xf32>
    %17 = arith.subf %15, %16 : vector<128x128xf32>
    %cst_10 = arith.constant -3.500000e-01 : f32
    %18 = vector.broadcast %cst_10 : f32 to vector<128x128xf32>
    %19 = arith.cmpf ogt, %5, %18 : vector<128x128xf32>
    %cst_11 = arith.constant 9.600000e+01 : f32
    %20 = vector.broadcast %cst_11 : f32 to vector<128x128xf32>
    %21 = arith.subf %13, %20 : vector<128x128xf32>
    %cst_12 = arith.constant -8.424000e+01 : f32
    %22 = vector.broadcast %cst_12 : f32 to vector<128x128xf32>
    %23 = arith.select %19, %21, %22 : vector<128x128xi1>, vector<128x128xf32>
    %24 = arith.select %10, %17, %23 : vector<128x128xi1>, vector<128x128xf32>
    %25 = math.exp %24 : vector<128x128xf32>
    %c0_13 = arith.constant 0 : index
    %c0_14 = arith.constant 0 : index
    %26 = vector.load %arg8[%c0_13, %c0_14] : memref<128x1xf32, #tpu.memory_space<vmem>>, vector<128x1xf32>
    %cst_15 = arith.constant 0.000000e+00 : f32
    %27 = vector.broadcast %cst_15 : f32 to vector<128x128xf32>
    %28 = arith.select %10, %25, %27 : vector<128x128xi1>, vector<128x128xf32>
    %cst_16 = arith.constant dense<0.000000e+00> : vector<128xf32>
    %29 = vector.multi_reduction <add>, %28, %cst_16 [1] : vector<128x128xf32> to vector<128xf32>
    %30 = vector.shape_cast %29 : vector<128xf32> to vector<128x1xf32>
    %31 = arith.addf %26, %30 : vector<128x1xf32>
    %c0_17 = arith.constant 0 : index
    %c0_18 = arith.constant 0 : index
    %32 = vector.load %arg8[%c0_17, %c0_18] : memref<128x1xf32, #tpu.memory_space<vmem>>, vector<128x1xf32>
    tpu.vector_store %arg8[%c0_17, %c0_18], %31 {strides = array<i32>} : memref<128x1xf32, #tpu.memory_space<vmem>>, vector<128x1xf32>,
    %c0_19 = arith.constant 0 : index
    %c0_20 = arith.constant 0 : index
    %33 = vector.load %arg9[%c0_19, %c0_20] : memref<128x1xf32, #tpu.memory_space<vmem>>, vector<128x1xf32>
    %cst_21 = arith.constant dense<0.000000e+00> : vector<128xf32>
    %34 = vector.multi_reduction <add>, %25, %cst_21 [1] : vector<128x128xf32> to vector<128xf32>
    %35 = vector.shape_cast %34 : vector<128xf32> to vector<128x1xf32>
    %36 = arith.addf %33, %35 : vector<128x1xf32>
    %c0_22 = arith.constant 0 : index
    %c0_23 = arith.constant 0 : index
    %37 = vector.load %arg9[%c0_22, %c0_23] : memref<128x1xf32, #tpu.memory_space<vmem>>, vector<128x1xf32>
    tpu.vector_store %arg9[%c0_22, %c0_23], %36 {strides = array<i32>} : memref<128x1xf32, #tpu.memory_space<vmem>>, vector<128x1xf32>,
    %c1_i32 = arith.constant 1 : i32
    %38 = arith.cmpi eq, %arg1, %c1_i32 : i32
    %39 = arith.extui %38 : i1 to i32
    %c0_i32_24 = arith.constant 0 : i32
    %40 = arith.cmpi ne, %39, %c0_i32_24 : i32
    scf.if %40 {
      %c0_25 = arith.constant 0 : index
      %c0_26 = arith.constant 0 : index
      %41 = vector.load %arg9[%c0_25, %c0_26] : memref<128x1xf32, #tpu.memory_space<vmem>>, vector<128x1xf32>
      %42 = math.log %41 : vector<128x1xf32>
      %c0_27 = arith.constant 0 : index
      %c0_28 = arith.constant 0 : index
      %43 = vector.load %arg8[%c0_27, %c0_28] : memref<128x1xf32, #tpu.memory_space<vmem>>, vector<128x1xf32>
      %44 = math.log %43 : vector<128x1xf32>
      %45 = arith.subf %42, %44 : vector<128x1xf32>
      %c0_29 = arith.constant 0 : index
      %c0_30 = arith.constant 0 : index
      %46 = vector.load %arg7[%c0_29, %c0_30] : memref<128x1xf32, #tpu.memory_space<vmem>>, vector<128x1xf32>
      tpu.vector_store %arg7[%c0_29, %c0_30], %45 {strides = array<i32>} : memref<128x1xf32, #tpu.memory_space<vmem>>, vector<128x1xf32>,
    } else {
    }
    return
  }
  func.func @transform_0(%arg0: i32, %arg1: i32, %arg2: memref<1xi32, #tpu.memory_space<smem>>) -> (i32, i32) {
    %c0_i32 = arith.constant 0 : i32
    %c0_i32_0 = arith.constant 0 : i32
    return %arg0, %c0_i32 : i32, i32
  }
  func.func @transform_1(%arg0: i32, %arg1: i32, %arg2: memref<1xi32, #tpu.memory_space<smem>>) -> (i32, i32) {
    %c0_i32 = arith.constant 0 : i32
    %c0_i32_0 = arith.constant 0 : i32
    return %arg1, %c0_i32 : i32, i32
  }
  func.func @transform_2(%arg0: i32, %arg1: i32, %arg2: memref<1xi32, #tpu.memory_space<smem>>) -> (i32, i32) {
    %c0_i32 = arith.constant 0 : i32
    %c0_i32_0 = arith.constant 0 : i32
    return %arg0, %c0_i32 : i32, i32
  }
  func.func @transform_3(%arg0: i32, %arg1: i32, %arg2: memref<1xi32, #tpu.memory_space<smem>>) -> (i32, i32) {
    %c0_i32 = arith.constant 0 : i32
    %c0_i32_0 = arith.constant 0 : i32
    return %c0_i32, %arg1 : i32, i32
  }
  func.func @transform_4(%arg0: i32, %arg1: i32, %arg2: memref<1xi32, #tpu.memory_space<smem>>) -> (i32, i32) {
    %c0_i32 = arith.constant 0 : i32
    %c0_i32_0 = arith.constant 0 : i32
    return %arg0, %c0_i32 : i32, i32
  }
}

</mosaic_0001>

<llo_original>
// kernel: tpu_custom_call.1
$region0: #{tpu_custom_call.1}
  #allocation0 [shape = 'u32[]', space=smem, size = 0x4, offset = 0x4, fixed_abs, tag = 'smem constant byte address 0x4 - core index']
  #allocation1 [shape = 'u32[144,128]{1,0:T(1,128)}', space=vmem, size = 0x12000, scoped, tag = 'internal scratch']
  #allocation2 [shape = 'f32[128,1]{1,0:T(8,128)}', space=vmem, size = 0x10000, scoped, tag = 'scratch operand']
  #allocation3 [shape = 'f32[128,1]{1,0:T(8,128)}', space=vmem, size = 0x10000, scoped, tag = 'scratch operand']
  #allocation4 [shape = 's32[1]{0}', space=sflag, size = 0x4, scoped, tag = 'scoped memory for tpu_custom_call.1']
  #allocation5 [shape = 's32[1]{0:T(128)S(6)}', space=smem, size = 0x200, scoped, tag = 'prefetched SMEM operand 0']
  %s0 = inlined_call_operand.<no memory space> [shape: s32[1], index: 0, kind: input, shape index: {}]
  %s1 = inlined_call_operand.vmem [shape: f32[256,64], index: 1, kind: input, shape index: {}]
  %s2 = inlined_call_operand.vmem [shape: f32[256,64], index: 2, kind: input, shape index: {}]
  %s3 = inlined_call_operand.vmem [shape: s32[256,1], index: 3, kind: input, shape index: {}]
  %s4 = inlined_call_operand.vmem [shape: s32[1,256], index: 4, kind: input, shape index: {}]
  %s5 = inlined_call_operand.vmem [shape: f32[256,1], index: 5, kind: output, shape index: {}]
  %s6 = sld [smem:[#allocation0]]
  $region57: #{tpu_custom_call.1} parent=0
    _
  %s8 = ssub.s32 1, %s6
  %s9 = scalar_select 0, %s8, %s6
  %10 = sst [smem:[#allocation5]] %s0
  loop: start=0, step=1, limit=6
  $region2: #{tpu_custom_call.1} parent=0 // loop_pre_header
    _
  $region3: #{tpu_custom_call.1} parent=0 // loop_header
    %s12 = sphi 0, %s16
    %p13 = scmp.ge.s32.totalorder %s12, 6
    %s19 = sphi 0, %s31
    %s20 = sphi 0, %s27
    %s21 = sphi 0, %s19
    %s22 = sphi 0, %s20
    %s23 = sphi 0, %s21
    %s24 = sphi 0, %s22
    %s34 = sphi 0, %s36
    %s37 = sphi 0, %s34
    %s38 = sphi 0, %s37
    %s54 = sphi 0, %s38
    %s60 = sphi 0, %s62
    %s63 = sphi 0, %s60
    %s64 = sphi 0, %s63
    %s80 = sphi 0, %s64
    %s86 = sphi 0, %s88
    %s89 = sphi 0, %s86
    %s90 = sphi 0, %s89
    %s106 = sphi 0, %s90
    %s112 = sphi 0, %s114
    %s115 = sphi 0, %s112
    %s116 = sphi 0, %s115
    %s132 = sphi 0, %s116
    %s138 = sphi 0, %s140
    %s141 = sphi 0, %s138
    %s142 = sphi 0, %s141
    %s158 = sphi 0, %s142
  $region4: #{tpu_custom_call.1} parent=0 // loop_header_branch
    %15 = sbr.rel (%p13) target = $region8
  $region5: #{tpu_custom_call.1} parent=0 // loop_body
    %s17 = ssub.s32 %s12, 1
    %s18 = ssub.s32 %s12, 2
    %s25 = sadd.s32 1, %s20
    %p26 = scmp.ge.s32.totalorder %s25, 2
    %s27 = scalar_select %p26, 0, %s25
    %s28 = sadd.s32 1, %s19
    %s29 = scalar_select %p26, %s28, %s19
    %p30 = scmp.ge.s32.totalorder %s29, 2
    %s31 = scalar_select %p30, 0, %s29
    %s32 = ssub.s32 %s19, %s31
    %p33 = scmp.eq.s32.totalorder %s32, 0
    %s35 = sadd.s32 %s34, 1
    %s36 = scalar_select %p33, %s34, %s35
    %p39 = pneg %p33
    %p40 = scmp.eq.s32.totalorder %s12, 3
    %p41 = por %p39, %p40
    %p42 = scmp.ne.s32.totalorder %s34, %s37
    %p43 = scmp.eq.s32.totalorder %s12, 0
    %p44 = por %p42, %p43
    %p45 = scmp.ne.s32.totalorder %s34, %s37
    %p46 = scmp.eq.s32.totalorder %s17, 3
    %p47 = por %p45, %p46
    %p48 = scmp.ne.s32.totalorder %s37, %s38
    %p49 = scmp.eq.s32.totalorder %s17, 0
    %p50 = por %p48, %p49
    %p51 = scmp.ne.s32.totalorder %s37, %s38
    %p52 = scmp.eq.s32.totalorder %s18, 3
    %p53 = por %p51, %p52
    %p55 = scmp.ne.s32.totalorder %s38, %s54
    %p56 = scmp.eq.s32.totalorder %s18, 0
    %p57 = por %p55, %p56
    %s58 = ssub.s32 %s20, %s27
    %p59 = scmp.eq.s32.totalorder %s58, 0
    %s61 = sadd.s32 %s60, 1
    %s62 = scalar_select %p59, %s60, %s61
    %p65 = pneg %p59
    %p66 = scmp.eq.s32.totalorder %s12, 3
    %p67 = por %p65, %p66
    %p68 = scmp.ne.s32.totalorder %s60, %s63
    %p69 = scmp.eq.s32.totalorder %s12, 0
    %p70 = por %p68, %p69
    %p71 = scmp.ne.s32.totalorder %s60, %s63
    %p72 = scmp.eq.s32.totalorder %s17, 3
    %p73 = por %p71, %p72
    %p74 = scmp.ne.s32.totalorder %s63, %s64
    %p75 = scmp.eq.s32.totalorder %s17, 0
    %p76 = por %p74, %p75
    %p77 = scmp.ne.s32.totalorder %s63, %s64
    %p78 = scmp.eq.s32.totalorder %s18, 3
    %p79 = por %p77, %p78
    %p81 = scmp.ne.s32.totalorder %s64, %s80
    %p82 = scmp.eq.s32.totalorder %s18, 0
    %p83 = por %p81, %p82
    %s84 = ssub.s32 %s19, %s31
    %p85 = scmp.eq.s32.totalorder %s84, 0
    %s87 = sadd.s32 %s86, 1
    %s88 = scalar_select %p85, %s86, %s87
    %p91 = pneg %p85
    %p92 = scmp.eq.s32.totalorder %s12, 3
    %p93 = por %p91, %p92
    %p94 = scmp.ne.s32.totalorder %s86, %s89
    %p95 = scmp.eq.s32.totalorder %s12, 0
    %p96 = por %p94, %p95
    %p97 = scmp.ne.s32.totalorder %s86, %s89
    %p98 = scmp.eq.s32.totalorder %s17, 3
    %p99 = por %p97, %p98
    %p100 = scmp.ne.s32.totalorder %s89, %s90
    %p101 = scmp.eq.s32.totalorder %s17, 0
    %p102 = por %p100, %p101
    %p103 = scmp.ne.s32.totalorder %s89, %s90
    %p104 = scmp.eq.s32.totalorder %s18, 3
    %p105 = por %p103, %p104
    %p107 = scmp.ne.s32.totalorder %s90, %s106
    %p108 = scmp.eq.s32.totalorder %s18, 0
    %p109 = por %p107, %p108
    %s110 = ssub.s32 %s20, %s27
    %p111 = scmp.eq.s32.totalorder %s110, 0
    %s113 = sadd.s32 %s112, 1
    %s114 = scalar_select %p111, %s112, %s113
    %p117 = pneg %p111
    %p118 = scmp.eq.s32.totalorder %s12, 3
    %p119 = por %p117, %p118
    %p120 = scmp.ne.s32.totalorder %s112, %s115
    %p121 = scmp.eq.s32.totalorder %s12, 0
    %p122 = por %p120, %p121
    %p123 = scmp.ne.s32.totalorder %s112, %s115
    %p124 = scmp.eq.s32.totalorder %s17, 3
    %p125 = por %p123, %p124
    %p126 = scmp.ne.s32.totalorder %s115, %s116
    %p127 = scmp.eq.s32.totalorder %s17, 0
    %p128 = por %p126, %p127
    %p129 = scmp.ne.s32.totalorder %s115, %s116
    %p130 = scmp.eq.s32.totalorder %s18, 3
    %p131 = por %p129, %p130
    %p133 = scmp.ne.s32.totalorder %s116, %s132
    %p134 = scmp.eq.s32.totalorder %s18, 0
    %p135 = por %p133, %p134
    %s136 = ssub.s32 %s19, %s31
    %p137 = scmp.eq.s32.totalorder %s136, 0
    %s139 = sadd.s32 %s138, 1
    %s140 = scalar_select %p137, %s138, %s139
    %p143 = pneg %p137
    %p144 = scmp.eq.s32.totalorder %s12, 3
    %p145 = por %p143, %p144
    %p146 = scmp.ne.s32.totalorder %s138, %s141
    %p147 = scmp.eq.s32.totalorder %s12, 0
    %p148 = por %p146, %p147
    %p149 = scmp.ne.s32.totalorder %s138, %s141
    %p150 = scmp.eq.s32.totalorder %s17, 3
    %p151 = por %p149, %p150
    %p152 = scmp.ne.s32.totalorder %s141, %s142
    %p153 = scmp.eq.s32.totalorder %s17, 0
    %p154 = por %p152, %p153
    %p155 = scmp.ne.s32.totalorder %s141, %s142
    %p156 = scmp.eq.s32.totalorder %s18, 3
    %p157 = por %p155, %p156
    %p159 = scmp.ne.s32.totalorder %s142, %s158
    %p160 = scmp.eq.s32.totalorder %s18, 0
    %p161 = por %p159, %p160
    %p162 = scmp.le.s32.totalorder 1, %s12
    %p163 = scmp.lt.s32.totalorder %s12, 5
    %p164 = pnand %p162, %p163
    %p165 = pneg %p164
    // Predicated region
    $region9: #{tpu_custom_call.1} parent=5 // pred_check
      _
    $region10: #{tpu_custom_call.1} parent=5 // pred_check_branch
      %167 = sbr.rel (%p164) target = $region12
    $region11: #{tpu_custom_call.1} parent=5 // pred_region
      %s168 = ssub.s32 %s12, 1
    $region12: #{tpu_custom_call.1} parent=5 // pred_fallthru
      _
    %p169 = scmp.lt.s32.totalorder %s12, 4
    // Predicated region
    $region13: #{tpu_custom_call.1} parent=5 // pred_check
      %p170 = pneg %p169
    $region14: #{tpu_custom_call.1} parent=5 // pred_check_branch
      %172 = sbr.rel (%p170) target = $region16
    $region15: #{tpu_custom_call.1} parent=5 // pred_region
      // Predicated region
      $region17: #{tpu_custom_call.1} parent=15 // pred_check
        %p173 = pneg %p44
      $region18: #{tpu_custom_call.1} parent=15 // pred_check_branch
        %175 = sbr.rel (%p173) target = $region20
      $region19: #{tpu_custom_call.1} parent=15 // pred_region
        %s176 = smul.u32 16, %s19
        %p177 = scmp.lt.s32.totalorder %s176, 31
        %s178 = scalar_select %p177, %s176, 31
        %s179 = smul.addr %s178, 8
        %s180 = scalar_lea.vmem %s1, %s179
        %s181 = smul.u32 16, %s19
      $region20: #{tpu_custom_call.1} parent=15 // pred_fallthru
        _
      // Predicated region
      $region21: #{tpu_custom_call.1} parent=15 // pred_check
        %p182 = pneg %p70
      $region22: #{tpu_custom_call.1} parent=15 // pred_check_branch
        %184 = sbr.rel (%p182) target = $region24
      $region23: #{tpu_custom_call.1} parent=15 // pred_region
        %s185 = smul.u32 16, %s20
        %p186 = scmp.lt.s32.totalorder %s185, 31
        %s187 = scalar_select %p186, %s185, 31
        %s188 = smul.addr %s187, 8
        %s189 = scalar_lea.vmem %s2, %s188
        %s190 = smul.u32 16, %s20
      $region24: #{tpu_custom_call.1} parent=15 // pred_fallthru
        _
      // Predicated region
      $region25: #{tpu_custom_call.1} parent=15 // pred_check
        %p191 = pneg %p96
      $region26: #{tpu_custom_call.1} parent=15 // pred_check_branch
        %193 = sbr.rel (%p191) target = $region28
      $region27: #{tpu_custom_call.1} parent=15 // pred_region
        %s194 = smul.u32 16, %s19
        %p195 = scmp.lt.s32.totalorder %s194, 31
        %s196 = scalar_select %p195, %s194, 31
        %s197 = smul.addr %s196, 8
        %s198 = scalar_lea.vmem %s3, %s197
        %s199 = smul.u32 16, %s19
      $region28: #{tpu_custom_call.1} parent=15 // pred_fallthru
        _
      // Predicated region
      $region29: #{tpu_custom_call.1} parent=15 // pred_check
        %p200 = pneg %p122
      $region30: #{tpu_custom_call.1} parent=15 // pred_check_branch
        %202 = sbr.rel (%p200) target = $region32
      $region31: #{tpu_custom_call.1} parent=15 // pred_region
        %p203 = scmp.lt.s32.totalorder %s20, 1
        %s204 = scalar_select %p203, %s20, 1
        %s205 = scalar_lea.vmem %s4, %s204
      $region32: #{tpu_custom_call.1} parent=15 // pred_fallthru
        _
    $region16: #{tpu_custom_call.1} parent=5 // pred_fallthru
      _
    %p206 = scmp.le.s32.totalorder 1, %s12
    %p207 = scmp.lt.s32.totalorder %s12, 5
    %p208 = pnand %p206, %p207
    %p209 = pneg %p208
    // Predicated region
    $region33: #{tpu_custom_call.1} parent=5 // pred_check
      _
    $region34: #{tpu_custom_call.1} parent=5 // pred_check_branch
      %211 = sbr.rel (%p208) target = $region36
    $region35: #{tpu_custom_call.1} parent=5 // pred_region
      %s212 = ssub.s32 %s12, 1
      %s213 = smul.u32 16, %s21
      %p214 = scmp.lt.s32.totalorder %s213, 31
      %s215 = scalar_select %p214, %s213, 31
      %s216 = smul.addr %s215, 8
      %s217 = scalar_lea.vmem %s1, %s216
      %p218 = pneg %p50
      %p219 = pneg %p47
      %s220 = smul.u32 16, %s22
      %p221 = scmp.lt.s32.totalorder %s220, 31
      %s222 = scalar_select %p221, %s220, 31
      %s223 = smul.addr %s222, 8
      %s224 = scalar_lea.vmem %s2, %s223
      %p225 = pneg %p76
      %p226 = pneg %p73
      %s227 = smul.u32 16, %s21
      %p228 = scmp.lt.s32.totalorder %s227, 31
      %s229 = scalar_select %p228, %s227, 31
      %s230 = smul.addr %s229, 8
      %s231 = scalar_lea.vmem %s3, %s230
      %p232 = pneg %p102
      %p233 = pneg %p99
      %p234 = scmp.lt.s32.totalorder %s22, 1
      %s235 = scalar_select %p234, %s22, 1
      %s236 = scalar_lea.vmem %s4, %s235
      %p237 = pneg %p128
      %p238 = pneg %p125
      %p239 = pneg %p154
      %p240 = pneg %p151
      %s241 = smul.u32 16, %s21
      %p242 = scmp.lt.s32.totalorder %s241, 31
      %s243 = scalar_select %p242, %s241, 31
      %s244 = smul.addr %s243, 8
      %s245 = scalar_lea.vmem %s5, %s244
      %s246 = smul.u32 16, %s21
      %p247 = scmp.lt.s32.totalorder %s246, 31
      %s248 = scalar_select %p247, %s246, 31
      %s249 = smul.addr %s248, 8
      %s250 = scalar_lea.vmem %s1, %s249
      %s251 = smul.u32 16, %s21
      %s252 = smul.u32 16, %s22
      %p253 = scmp.lt.s32.totalorder %s252, 31
      %s254 = scalar_select %p253, %s252, 31
      %s255 = smul.addr %s254, 8
      %s256 = scalar_lea.vmem %s2, %s255
      %s257 = smul.u32 16, %s22
      %s258 = smul.u32 16, %s21
      %p259 = scmp.lt.s32.totalorder %s258, 31
      %s260 = scalar_select %p259, %s258, 31
      %s261 = smul.addr %s260, 8
      %s262 = scalar_lea.vmem %s3, %s261
      %s263 = smul.u32 16, %s21
      %p264 = scmp.lt.s32.totalorder %s22, 1
      %s265 = scalar_select %p264, %s22, 1
      %s266 = scalar_lea.vmem %s4, %s265
      %s267 = smul.u32 16, %s21
      %p268 = scmp.lt.s32.totalorder %s267, 31
      %s269 = scalar_select %p268, %s267, 31
      %s270 = smul.addr %s269, 8
      %s271 = scalar_lea.vmem %s5, %s270
      %s272 = smul.u32 16, %s21
      %p273 = scmp.eq.s32.totalorder %s22, 0
      // Predicated region
      $region37: #{tpu_custom_call.1} parent=35 // pred_check
        %p274 = pneg %p273
      $region38: #{tpu_custom_call.1} parent=35 // pred_check_branch
        %276 = sbr.rel (%p274) target = $region40
      $region39: #{tpu_custom_call.1} parent=35 // pred_region
        %vm277 = vcmask 7168
        %278 = vst.msk [vmem:[#allocation2] sm:$0xff] %vm277, 0.0
        %279 = vst.msk [vmem:[#allocation2 + $0x8] sm:$0xff] %vm277, 0.0
        %280 = vst.msk [vmem:[#allocation2 + $0x10] sm:$0xff] %vm277, 0.0
        %281 = vst.msk [vmem:[#allocation2 + $0x18] sm:$0xff] %vm277, 0.0
        %282 = vst.msk [vmem:[#allocation2 + $0x20] sm:$0xff] %vm277, 0.0
        %283 = vst.msk [vmem:[#allocation2 + $0x28] sm:$0xff] %vm277, 0.0
        %284 = vst.msk [vmem:[#allocation2 + $0x30] sm:$0xff] %vm277, 0.0
        %285 = vst.msk [vmem:[#allocation2 + $0x38] sm:$0xff] %vm277, 0.0
        %286 = vst.msk [vmem:[#allocation2 + $0x40] sm:$0xff] %vm277, 0.0
        %287 = vst.msk [vmem:[#allocation2 + $0x48] sm:$0xff] %vm277, 0.0
        %288 = vst.msk [vmem:[#allocation2 + $0x50] sm:$0xff] %vm277, 0.0
        %289 = vst.msk [vmem:[#allocation2 + $0x58] sm:$0xff] %vm277, 0.0
        %290 = vst.msk [vmem:[#allocation2 + $0x60] sm:$0xff] %vm277, 0.0
        %291 = vst.msk [vmem:[#allocation2 + $0x68] sm:$0xff] %vm277, 0.0
        %292 = vst.msk [vmem:[#allocation2 + $0x70] sm:$0xff] %vm277, 0.0
        %293 = vst.msk [vmem:[#allocation2 + $0x78] sm:$0xff] %vm277, 0.0
        %294 = vst.msk [vmem:[#allocation3] sm:$0xff] %vm277, 0.0
        %295 = vst.msk [vmem:[#allocation3 + $0x8] sm:$0xff] %vm277, 0.0
        %296 = vst.msk [vmem:[#allocation3 + $0x10] sm:$0xff] %vm277, 0.0
        %297 = vst.msk [vmem:[#allocation3 + $0x18] sm:$0xff] %vm277, 0.0
        %298 = vst.msk [vmem:[#allocation3 + $0x20] sm:$0xff] %vm277, 0.0
        %299 = vst.msk [vmem:[#allocation3 + $0x28] sm:$0xff] %vm277, 0.0
        %300 = vst.msk [vmem:[#allocation3 + $0x30] sm:$0xff] %vm277, 0.0
        %301 = vst.msk [vmem:[#allocation3 + $0x38] sm:$0xff] %vm277, 0.0
        %302 = vst.msk [vmem:[#allocation3 + $0x40] sm:$0xff] %vm277, 0.0
        %303 = vst.msk [vmem:[#allocation3 + $0x48] sm:$0xff] %vm277, 0.0
        %304 = vst.msk [vmem:[#allocation3 + $0x50] sm:$0xff] %vm277, 0.0
        %305 = vst.msk [vmem:[#allocation3 + $0x58] sm:$0xff] %vm277, 0.0
        %306 = vst.msk [vmem:[#allocation3 + $0x60] sm:$0xff] %vm277, 0.0
        %307 = vst.msk [vmem:[#allocation3 + $0x68] sm:$0xff] %vm277, 0.0
        %308 = vst.msk [vmem:[#allocation3 + $0x70] sm:$0xff] %vm277, 0.0
        %309 = vst.msk [vmem:[#allocation3 + $0x78] sm:$0xff] %vm277, 0.0
      $region40: #{tpu_custom_call.1} parent=35 // pred_fallthru
        _
      %v310 = vld [vmem:[%s250] sm:$0xff]
      %v311 = vld [vmem:[%s250 + $0x8] sm:$0xff]
      %v312 = vld [vmem:[%s250 + $0x10] sm:$0xff]
      %v313 = vld [vmem:[%s250 + $0x18] sm:$0xff]
      %v314 = vld [vmem:[%s250 + $0x20] sm:$0xff]
      %v315 = vld [vmem:[%s250 + $0x28] sm:$0xff]
      %v316 = vld [vmem:[%s250 + $0x30] sm:$0xff]
      %v317 = vld [vmem:[%s250 + $0x38] sm:$0xff]
      %v318 = vld [vmem:[%s250 + $0x40] sm:$0xff]
      %v319 = vld [vmem:[%s250 + $0x48] sm:$0xff]
      %v320 = vld [vmem:[%s250 + $0x50] sm:$0xff]
      %v321 = vld [vmem:[%s250 + $0x58] sm:$0xff]
      %v322 = vld [vmem:[%s250 + $0x60] sm:$0xff]
      %v323 = vld [vmem:[%s250 + $0x68] sm:$0xff]
      %v324 = vld [vmem:[%s250 + $0x70] sm:$0xff]
      %v325 = vld [vmem:[%s250 + $0x78] sm:$0xff]
      %v326 = vld [vmem:[%s256] sm:$0xff]
      %v327 = vld [vmem:[%s256 + $0x8] sm:$0xff]
      %v328 = vld [vmem:[%s256 + $0x10] sm:$0xff]
      %v329 = vld [vmem:[%s256 + $0x18] sm:$0xff]
      %v330 = vld [vmem:[%s256 + $0x20] sm:$0xff]
      %v331 = vld [vmem:[%s256 + $0x28] sm:$0xff]
      %v332 = vld [vmem:[%s256 + $0x30] sm:$0xff]
      %v333 = vld [vmem:[%s256 + $0x38] sm:$0xff]
      %v334 = vld [vmem:[%s256 + $0x40] sm:$0xff]
      %v335 = vld [vmem:[%s256 + $0x48] sm:$0xff]
      %v336 = vld [vmem:[%s256 + $0x50] sm:$0xff]
      %v337 = vld [vmem:[%s256 + $0x58] sm:$0xff]
      %v338 = vld [vmem:[%s256 + $0x60] sm:$0xff]
      %v339 = vld [vmem:[%s256 + $0x68] sm:$0xff]
      %v340 = vld [vmem:[%s256 + $0x70] sm:$0xff]
      %v341 = vld [vmem:[%s256 + $0x78] sm:$0xff]
      %vm342 = vcmask 523264
      %v344 = vsel %vm342, %v310, 0
      %v347 = vsel %vm342, %v311, 0
      %v350 = vsel %vm342, %v312, 0
      %v353 = vsel %vm342, %v313, 0
      %v356 = vsel %vm342, %v314, 0
      %v359 = vsel %vm342, %v315, 0
      %v362 = vsel %vm342, %v316, 0
      %v365 = vsel %vm342, %v317, 0
      %v368 = vsel %vm342, %v318, 0
      %v371 = vsel %vm342, %v319, 0
      %v374 = vsel %vm342, %v320, 0
      %v377 = vsel %vm342, %v321, 0
      %v380 = vsel %vm342, %v322, 0
      %v383 = vsel %vm342, %v323, 0
      %v386 = vsel %vm342, %v324, 0
      %v389 = vsel %vm342, %v325, 0
      %v392 = vsel %vm342, %v326, 0
      %v395 = vsel %vm342, %v327, 0
      %v398 = vsel %vm342, %v328, 0
      %v401 = vsel %vm342, %v329, 0
      %v404 = vsel %vm342, %v330, 0
      %v407 = vsel %vm342, %v331, 0
      %v410 = vsel %vm342, %v332, 0
      %v413 = vsel %vm342, %v333, 0
      %v416 = vsel %vm342, %v334, 0
      %v419 = vsel %vm342, %v335, 0
      %v422 = vsel %vm342, %v336, 0
      %v425 = vsel %vm342, %v337, 0
      %v428 = vsel %vm342, %v338, 0
      %v431 = vsel %vm342, %v339, 0
      %v434 = vsel %vm342, %v340, 0
      %v437 = vsel %vm342, %v341, 0
      %439 = vmatprep.subr.mxu0 0.0
      %v440 = vand.u32 %v437, 4294901760
      %441 = vmatpush1.xpose.msra.mxu0 %v440
      %442 = vmatprep.subr.mxu0 0.0
      %v443 = vand.u32 %v434, 4294901760
      %444 = vmatpush1.xpose.msra.mxu0 %v443
      %445 = vmatprep.subr.mxu0 0.0
      %v446 = vand.u32 %v431, 4294901760
      %447 = vmatpush1.xpose.msra.mxu0 %v446
      %448 = vmatprep.subr.mxu0 0.0
      %v449 = vand.u32 %v428, 4294901760
      %450 = vmatpush1.xpose.msra.mxu0 %v449
      %451 = vmatprep.subr.mxu0 0.0
      %v452 = vand.u32 %v425, 4294901760
      %453 = vmatpush1.xpose.msra.mxu0 %v452
      %454 = vmatprep.subr.mxu0 0.0
      %v455 = vand.u32 %v422, 4294901760
      %456 = vmatpush1.xpose.msra.mxu0 %v455
      %457 = vmatprep.subr.mxu0 0.0
      %v458 = vand.u32 %v419, 4294901760
      %459 = vmatpush1.xpose.msra.mxu0 %v458
      %460 = vmatprep.subr.mxu0 0.0
      %v461 = vand.u32 %v416, 4294901760
      %462 = vmatpush1.xpose.msra.mxu0 %v461
      %463 = vmatprep.subr.mxu0 0.0
      %v464 = vand.u32 %v413, 4294901760
      %465 = vmatpush1.xpose.msra.mxu0 %v464
      %466 = vmatprep.subr.mxu0 0.0
      %v467 = vand.u32 %v410, 4294901760
      %468 = vmatpush1.xpose.msra.mxu0 %v467
      %469 = vmatprep.subr.mxu0 0.0
      %v470 = vand.u32 %v407, 4294901760
      %471 = vmatpush1.xpose.msra.mxu0 %v470
      %472 = vmatprep.subr.mxu0 0.0
      %v473 = vand.u32 %v404, 4294901760
      %474 = vmatpush1.xpose.msra.mxu0 %v473
      %475 = vmatprep.subr.mxu0 0.0
      %v476 = vand.u32 %v401, 4294901760
      %477 = vmatpush1.xpose.msra.mxu0 %v476
      %478 = vmatprep.subr.mxu0 0.0
      %v479 = vand.u32 %v398, 4294901760
      %480 = vmatpush1.xpose.msra.mxu0 %v479
      %481 = vmatprep.subr.mxu0 0.0
      %v482 = vand.u32 %v395, 4294901760
      %483 = vmatpush1.xpose.msra.mxu0 %v482
      %484 = vmatprep.subr.mxu0 0.0
      %v485 = vand.u32 %v392, 4294901760
      %486 = vmatpush1.xpose.msra.mxu0 %v485
      %487 = vmatprep.subr.mxu0 0.0
      %488 = vmatpush2.xpose.msra.mxu0 0.0
      %489 = vmatprep.subr.mxu0 0.0
      %490 = vmatpush2.xpose.msra.mxu0 0.0
      %491 = vmatprep.subr.mxu0 0.0
      %492 = vmatpush2.xpose.msra.mxu0 0.0
      %493 = vmatprep.subr.mxu0 0.0
      %494 = vmatpush2.xpose.msra.mxu0 0.0
      %495 = vmatprep.subr.mxu0 0.0
      %496 = vmatpush2.xpose.msra.mxu0 0.0
      %497 = vmatprep.subr.mxu0 0.0
      %498 = vmatpush2.xpose.msra.mxu0 0.0
      %499 = vmatprep.subr.mxu0 0.0
      %500 = vmatpush2.xpose.msra.mxu0 0.0
      %501 = vmatprep.subr.mxu0 0.0
      %502 = vmatpush2.xpose.msra.mxu0 0.0
      %503 = vmatprep.subr.mxu0 0.0
      %504 = vmatpush2.xpose.msra.mxu0 0.0
      %505 = vmatprep.subr.mxu0 0.0
      %506 = vmatpush2.xpose.msra.mxu0 0.0
      %507 = vmatprep.subr.mxu0 0.0
      %508 = vmatpush2.xpose.msra.mxu0 0.0
      %509 = vmatprep.subr.mxu0 0.0
      %510 = vmatpush2.xpose.msra.mxu0 0.0
      %511 = vmatprep.subr.mxu0 0.0
      %512 = vmatpush2.xpose.msra.mxu0 0.0
      %513 = vmatprep.subr.mxu0 0.0
      %514 = vmatpush2.xpose.msra.mxu0 0.0
      %515 = vmatprep.subr.mxu0 0.0
      %516 = vmatpush2.xpose.msra.mxu0 0.0
      %517 = vmatprep.subr.mxu0 0.0
      %518 = vmatpush2.xpose.msra.mxu0 0.0
      %519 = vmatprep.mubr.f32.mxu0 0.0
      %v520 = vand.u32 %v344, 4294901760
      %v521 = vsub.f32 %v344, %v520
      %v522 = vand.u32 %v521, 4294901760
      %v523 = vsub.f32 %v521, %v522
      %v524 = vand.u32 %v523, 4294901760
      %525 = vmatmul.mubr.f32.gmra.mxu0 %v524
      %v526 = vpop.f32.mrf.mxu0
      %v527 = vadd.f32 0.0, %v526
      %v528 = vpop.f32.mrf.mxu0
      %529 = vmatprep.mubr.f32.mxu0 0.0
      %v530 = vand.u32 %v347, 4294901760
      %v531 = vsub.f32 %v347, %v530
      %v532 = vand.u32 %v531, 4294901760
      %v533 = vsub.f32 %v531, %v532
      %v534 = vand.u32 %v533, 4294901760
      %535 = vmatmul.mubr.f32.gmra.mxu0 %v534
      %v536 = vpop.f32.mrf.mxu0
      %v537 = vadd.f32 0.0, %v536
      %v538 = vpop.f32.mrf.mxu0
      %539 = vmatprep.mubr.f32.mxu0 0.0
      %v540 = vand.u32 %v350, 4294901760
      %v541 = vsub.f32 %v350, %v540
      %v542 = vand.u32 %v541, 4294901760
      %v543 = vsub.f32 %v541, %v542
      %v544 = vand.u32 %v543, 4294901760
      %545 = vmatmul.mubr.f32.gmra.mxu0 %v544
      %v546 = vpop.f32.mrf.mxu0
      %v547 = vadd.f32 0.0, %v546
      %v548 = vpop.f32.mrf.mxu0
      %549 = vmatprep.mubr.f32.mxu0 0.0
      %v550 = vand.u32 %v353, 4294901760
      %v551 = vsub.f32 %v353, %v550
      %v552 = vand.u32 %v551, 4294901760
      %v553 = vsub.f32 %v551, %v552
      %v554 = vand.u32 %v553, 4294901760
      %555 = vmatmul.mubr.f32.gmra.mxu0 %v554
      %v556 = vpop.f32.mrf.mxu0
      %v557 = vadd.f32 0.0, %v556
      %v558 = vpop.f32.mrf.mxu0
      %559 = vmatprep.mubr.f32.mxu0 0.0
      %v560 = vand.u32 %v356, 4294901760
      %v561 = vsub.f32 %v356, %v560
      %v562 = vand.u32 %v561, 4294901760
      %v563 = vsub.f32 %v561, %v562
      %v564 = vand.u32 %v563, 4294901760
      %565 = vmatmul.mubr.f32.gmra.mxu0 %v564
      %v566 = vpop.f32.mrf.mxu0
      %v567 = vadd.f32 0.0, %v566
      %v568 = vpop.f32.mrf.mxu0
      %569 = vmatprep.mubr.f32.mxu0 0.0
      %v570 = vand.u32 %v359, 4294901760
      %v571 = vsub.f32 %v359, %v570
      %v572 = vand.u32 %v571, 4294901760
      %v573 = vsub.f32 %v571, %v572
      %v574 = vand.u32 %v573, 4294901760
      %575 = vmatmul.mubr.f32.gmra.mxu0 %v574
      %v576 = vpop.f32.mrf.mxu0
      %v577 = vadd.f32 0.0, %v576
      %v578 = vpop.f32.mrf.mxu0
      %579 = vmatprep.mubr.f32.mxu0 0.0
      %v580 = vand.u32 %v362, 4294901760
      %v581 = vsub.f32 %v362, %v580
      %v582 = vand.u32 %v581, 4294901760
      %v583 = vsub.f32 %v581, %v582
      %v584 = vand.u32 %v583, 4294901760
      %585 = vmatmul.mubr.f32.gmra.mxu0 %v584
      %v586 = vpop.f32.mrf.mxu0
      %v587 = vadd.f32 0.0, %v586
      %v588 = vpop.f32.mrf.mxu0
      %589 = vmatprep.mubr.f32.mxu0 0.0
      %v590 = vand.u32 %v365, 4294901760
      %v591 = vsub.f32 %v365, %v590
      %v592 = vand.u32 %v591, 4294901760
      %v593 = vsub.f32 %v591, %v592
      %v594 = vand.u32 %v593, 4294901760
      %595 = vmatmul.mubr.f32.gmra.mxu0 %v594
      %v596 = vpop.f32.mrf.mxu0
      %v597 = vadd.f32 0.0, %v596
      %v598 = vpop.f32.mrf.mxu0
      %599 = vmatprep.mubr.f32.mxu0 0.0
      %v600 = vand.u32 %v368, 4294901760
      %v601 = vsub.f32 %v368, %v600
      %v602 = vand.u32 %v601, 4294901760
      %v603 = vsub.f32 %v601, %v602
      %v604 = vand.u32 %v603, 4294901760
      %605 = vmatmul.mubr.f32.gmra.mxu0 %v604
      %v606 = vpop.f32.mrf.mxu0
      %v607 = vadd.f32 0.0, %v606
      %v608 = vpop.f32.mrf.mxu0
      %609 = vmatprep.mubr.f32.mxu0 0.0
      %v610 = vand.u32 %v371, 4294901760
      %v611 = vsub.f32 %v371, %v610
      %v612 = vand.u32 %v611, 4294901760
      %v613 = vsub.f32 %v611, %v612
      %v614 = vand.u32 %v613, 4294901760
      %615 = vmatmul.mubr.f32.gmra.mxu0 %v614
      %v616 = vpop.f32.mrf.mxu0
      %v617 = vadd.f32 0.0, %v616
      %v618 = vpop.f32.mrf.mxu0
      %619 = vmatprep.mubr.f32.mxu0 0.0
      %v620 = vand.u32 %v374, 4294901760
      %v621 = vsub.f32 %v374, %v620
      %v622 = vand.u32 %v621, 4294901760
      %v623 = vsub.f32 %v621, %v622
      %v624 = vand.u32 %v623, 4294901760
      %625 = vmatmul.mubr.f32.gmra.mxu0 %v624
      %v626 = vpop.f32.mrf.mxu0
      %v627 = vadd.f32 0.0, %v626
      %v628 = vpop.f32.mrf.mxu0
      %629 = vmatprep.mubr.f32.mxu0 0.0
      %v630 = vand.u32 %v377, 4294901760
      %v631 = vsub.f32 %v377, %v630
      %v632 = vand.u32 %v631, 4294901760
      %v633 = vsub.f32 %v631, %v632
      %v634 = vand.u32 %v633, 4294901760
      %635 = vmatmul.mubr.f32.gmra.mxu0 %v634
      %v636 = vpop.f32.mrf.mxu0
      %v637 = vadd.f32 0.0, %v636
      %v638 = vpop.f32.mrf.mxu0
      %639 = vmatprep.mubr.f32.mxu0 0.0
      %v640 = vand.u32 %v380, 4294901760
      %v641 = vsub.f32 %v380, %v640
      %v642 = vand.u32 %v641, 4294901760
      %v643 = vsub.f32 %v641, %v642
      %v644 = vand.u32 %v643, 4294901760
      %645 = vmatmul.mubr.f32.gmra.mxu0 %v644
      %v646 = vpop.f32.mrf.mxu0
      %v647 = vadd.f32 0.0, %v646
      %v648 = vpop.f32.mrf.mxu0
      %649 = vmatprep.mubr.f32.mxu0 0.0
      %v650 = vand.u32 %v383, 4294901760
      %v651 = vsub.f32 %v383, %v650
      %v652 = vand.u32 %v651, 4294901760
      %v653 = vsub.f32 %v651, %v652
      %v654 = vand.u32 %v653, 4294901760
      %655 = vmatmul.mubr.f32.gmra.mxu0 %v654
      %v656 = vpop.f32.mrf.mxu0
      %v657 = vadd.f32 0.0, %v656
      %v658 = vpop.f32.mrf.mxu0
      %659 = vmatprep.mubr.f32.mxu0 0.0
      %v660 = vand.u32 %v386, 4294901760
      %v661 = vsub.f32 %v386, %v660
      %v662 = vand.u32 %v661, 4294901760
      %v663 = vsub.f32 %v661, %v662
      %v664 = vand.u32 %v663, 4294901760
      %665 = vmatmul.mubr.f32.gmra.mxu0 %v664
      %v666 = vpop.f32.mrf.mxu0
      %v667 = vadd.f32 0.0, %v666
      %v668 = vpop.f32.mrf.mxu0
      %669 = vmatprep.mubr.f32.mxu0 0.0
      %v670 = vand.u32 %v389, 4294901760
      %v671 = vsub.f32 %v389, %v670
      %v672 = vand.u32 %v671, 4294901760
      %v673 = vsub.f32 %v671, %v672
      %v674 = vand.u32 %v673, 4294901760
      %675 = vmatmul.mubr.f32.gmra.mxu0 %v674
      %v676 = vpop.f32.mrf.mxu0
      %v677 = vadd.f32 0.0, %v676
      %v678 = vpop.f32.mrf.mxu0
      %679 = vdwg.mxu0
      %680 = vmatprep.subr.mxu0 0.0
      %v681 = vand.u32 %v437, 4294901760
      %v682 = vsub.f32 %v437, %v681
      %v683 = vand.u32 %v682, 4294901760
      %v684 = vsub.f32 %v682, %v683
      %v685 = vand.u32 %v684, 4294901760
      %686 = vmatpush1.xpose.msra.mxu0 %v685
      %687 = vmatprep.subr.mxu0 0.0
      %v688 = vand.u32 %v434, 4294901760
      %v689 = vsub.f32 %v434, %v688
      %v690 = vand.u32 %v689, 4294901760
      %v691 = vsub.f32 %v689, %v690
      %v692 = vand.u32 %v691, 4294901760
      %693 = vmatpush1.xpose.msra.mxu0 %v692
      %694 = vmatprep.subr.mxu0 0.0
      %v695 = vand.u32 %v431, 4294901760
      %v696 = vsub.f32 %v431, %v695
      %v697 = vand.u32 %v696, 4294901760
      %v698 = vsub.f32 %v696, %v697
      %v699 = vand.u32 %v698, 4294901760
      %700 = vmatpush1.xpose.msra.mxu0 %v699
      %701 = vmatprep.subr.mxu0 0.0
      %v702 = vand.u32 %v428, 4294901760
      %v703 = vsub.f32 %v428, %v702
      %v704 = vand.u32 %v703, 4294901760
      %v705 = vsub.f32 %v703, %v704
      %v706 = vand.u32 %v705, 4294901760
      %707 = vmatpush1.xpose.msra.mxu0 %v706
      %708 = vmatprep.subr.mxu0 0.0
      %v709 = vand.u32 %v425, 4294901760
      %v710 = vsub.f32 %v425, %v709
      %v711 = vand.u32 %v710, 4294901760
      %v712 = vsub.f32 %v710, %v711
      %v713 = vand.u32 %v712, 4294901760
      %714 = vmatpush1.xpose.msra.mxu0 %v713
      %715 = vmatprep.subr.mxu0 0.0
      %v716 = vand.u32 %v422, 4294901760
      %v717 = vsub.f32 %v422, %v716
      %v718 = vand.u32 %v717, 4294901760
      %v719 = vsub.f32 %v717, %v718
      %v720 = vand.u32 %v719, 4294901760
      %721 = vmatpush1.xpose.msra.mxu0 %v720
      %722 = vmatprep.subr.mxu0 0.0
      %v723 = vand.u32 %v419, 4294901760
      %v724 = vsub.f32 %v419, %v723
      %v725 = vand.u32 %v724, 4294901760
      %v726 = vsub.f32 %v724, %v725
      %v727 = vand.u32 %v726, 4294901760
      %728 = vmatpush1.xpose.msra.mxu0 %v727
      %729 = vmatprep.subr.mxu0 0.0
      %v730 = vand.u32 %v416, 4294901760
      %v731 = vsub.f32 %v416, %v730
      %v732 = vand.u32 %v731, 4294901760
      %v733 = vsub.f32 %v731, %v732
      %v734 = vand.u32 %v733, 4294901760
      %735 = vmatpush1.xpose.msra.mxu0 %v734
      %736 = vmatprep.subr.mxu0 0.0
      %v737 = vand.u32 %v413, 4294901760
      %v738 = vsub.f32 %v413, %v737
      %v739 = vand.u32 %v738, 4294901760
      %v740 = vsub.f32 %v738, %v739
      %v741 = vand.u32 %v740, 4294901760
      %742 = vmatpush1.xpose.msra.mxu0 %v741
      %743 = vmatprep.subr.mxu0 0.0
      %v744 = vand.u32 %v410, 4294901760
      %v745 = vsub.f32 %v410, %v744
      %v746 = vand.u32 %v745, 4294901760
      %v747 = vsub.f32 %v745, %v746
      %v748 = vand.u32 %v747, 4294901760
      %749 = vmatpush1.xpose.msra.mxu0 %v748
      %750 = vmatprep.subr.mxu0 0.0
      %v751 = vand.u32 %v407, 4294901760
      %v752 = vsub.f32 %v407, %v751
      %v753 = vand.u32 %v752, 4294901760
      %v754 = vsub.f32 %v752, %v753
      %v755 = vand.u32 %v754, 4294901760
      %756 = vmatpush1.xpose.msra.mxu0 %v755
      %757 = vmatprep.subr.mxu0 0.0
      %v758 = vand.u32 %v404, 4294901760
      %v759 = vsub.f32 %v404, %v758
      %v760 = vand.u32 %v759, 4294901760
      %v761 = vsub.f32 %v759, %v760
      %v762 = vand.u32 %v761, 4294901760
      %763 = vmatpush1.xpose.msra.mxu0 %v762
      %764 = vmatprep.subr.mxu0 0.0
      %v765 = vand.u32 %v401, 4294901760
      %v766 = vsub.f32 %v401, %v765
      %v767 = vand.u32 %v766, 4294901760
      %v768 = vsub.f32 %v766, %v767
      %v769 = vand.u32 %v768, 4294901760
      %770 = vmatpush1.xpose.msra.mxu0 %v769
      %771 = vmatprep.subr.mxu0 0.0
      %v772 = vand.u32 %v398, 4294901760
      %v773 = vsub.f32 %v398, %v772
      %v774 = vand.u32 %v773, 4294901760
      %v775 = vsub.f32 %v773, %v774
      %v776 = vand.u32 %v775, 4294901760
      %777 = vmatpush1.xpose.msra.mxu0 %v776
      %778 = vmatprep.subr.mxu0 0.0
      %v779 = vand.u32 %v395, 4294901760
      %v780 = vsub.f32 %v395, %v779
      %v781 = vand.u32 %v780, 4294901760
      %v782 = vsub.f32 %v780, %v781
      %v783 = vand.u32 %v782, 4294901760
      %784 = vmatpush1.xpose.msra.mxu0 %v783
      %785 = vmatprep.subr.mxu0 0.0
      %v786 = vand.u32 %v392, 4294901760
      %v787 = vsub.f32 %v392, %v786
      %v788 = vand.u32 %v787, 4294901760
      %v789 = vsub.f32 %v787, %v788
      %v790 = vand.u32 %v789, 4294901760
      %791 = vmatpush1.xpose.msra.mxu0 %v790
      %792 = vmatprep.subr.mxu0 0.0
      %793 = vmatpush2.xpose.msra.mxu0 0.0
      %794 = vmatprep.subr.mxu0 0.0
      %795 = vmatpush2.xpose.msra.mxu0 0.0
      %796 = vmatprep.subr.mxu0 0.0
      %797 = vmatpush2.xpose.msra.mxu0 0.0
      %798 = vmatprep.subr.mxu0 0.0
      %799 = vmatpush2.xpose.msra.mxu0 0.0
      %800 = vmatprep.subr.mxu0 0.0
      %801 = vmatpush2.xpose.msra.mxu0 0.0
      %802 = vmatprep.subr.mxu0 0.0
      %803 = vmatpush2.xpose.msra.mxu0 0.0
      %804 = vmatprep.subr.mxu0 0.0
      %805 = vmatpush2.xpose.msra.mxu0 0.0
      %806 = vmatprep.subr.mxu0 0.0
      %807 = vmatpush2.xpose.msra.mxu0 0.0
      %808 = vmatprep.subr.mxu0 0.0
      %809 = vmatpush2.xpose.msra.mxu0 0.0
      %810 = vmatprep.subr.mxu0 0.0
      %811 = vmatpush2.xpose.msra.mxu0 0.0
      %812 = vmatprep.subr.mxu0 0.0
      %813 = vmatpush2.xpose.msra.mxu0 0.0
      %814 = vmatprep.subr.mxu0 0.0
      %815 = vmatpush2.xpose.msra.mxu0 0.0
      %816 = vmatprep.subr.mxu0 0.0
      %817 = vmatpush2.xpose.msra.mxu0 0.0
      %818 = vmatprep.subr.mxu0 0.0
      %819 = vmatpush2.xpose.msra.mxu0 0.0
      %820 = vmatprep.subr.mxu0 0.0
      %821 = vmatpush2.xpose.msra.mxu0 0.0
      %822 = vmatprep.subr.mxu0 0.0
      %823 = vmatpush2.xpose.msra.mxu0 0.0
      %824 = vmatprep.mubr.f32.mxu0 0.0
      %v825 = vand.u32 %v344, 4294901760
      %826 = vmatmul.mubr.f32.gmra.mxu0 %v825
      %v827 = vpop.f32.mrf.mxu0
      %v828 = vadd.f32 %v527, %v827
      %v829 = vpop.f32.mrf.mxu0
      %830 = vmatprep.mubr.f32.mxu0 0.0
      %v831 = vand.u32 %v347, 4294901760
      %832 = vmatmul.mubr.f32.gmra.mxu0 %v831
      %v833 = vpop.f32.mrf.mxu0
      %v834 = vadd.f32 %v537, %v833
      %v835 = vpop.f32.mrf.mxu0
      %836 = vmatprep.mubr.f32.mxu0 0.0
      %v837 = vand.u32 %v350, 4294901760
      %838 = vmatmul.mubr.f32.gmra.mxu0 %v837
      %v839 = vpop.f32.mrf.mxu0
      %v840 = vadd.f32 %v547, %v839
      %v841 = vpop.f32.mrf.mxu0
      %842 = vmatprep.mubr.f32.mxu0 0.0
      %v843 = vand.u32 %v353, 4294901760
      %844 = vmatmul.mubr.f32.gmra.mxu0 %v843
      %v845 = vpop.f32.mrf.mxu0
      %v846 = vadd.f32 %v557, %v845
      %v847 = vpop.f32.mrf.mxu0
      %848 = vmatprep.mubr.f32.mxu0 0.0
      %v849 = vand.u32 %v356, 4294901760
      %850 = vmatmul.mubr.f32.gmra.mxu0 %v849
      %v851 = vpop.f32.mrf.mxu0
      %v852 = vadd.f32 %v567, %v851
      %v853 = vpop.f32.mrf.mxu0
      %854 = vmatprep.mubr.f32.mxu0 0.0
      %v855 = vand.u32 %v359, 4294901760
      %856 = vmatmul.mubr.f32.gmra.mxu0 %v855
      %v857 = vpop.f32.mrf.mxu0
      %v858 = vadd.f32 %v577, %v857
      %v859 = vpop.f32.mrf.mxu0
      %860 = vmatprep.mubr.f32.mxu0 0.0
      %v861 = vand.u32 %v362, 4294901760
      %862 = vmatmul.mubr.f32.gmra.mxu0 %v861
      %v863 = vpop.f32.mrf.mxu0
      %v864 = vadd.f32 %v587, %v863
      %v865 = vpop.f32.mrf.mxu0
      %866 = vmatprep.mubr.f32.mxu0 0.0
      %v867 = vand.u32 %v365, 4294901760
      %868 = vmatmul.mubr.f32.gmra.mxu0 %v867
      %v869 = vpop.f32.mrf.mxu0
      %v870 = vadd.f32 %v597, %v869
      %v871 = vpop.f32.mrf.mxu0
      %872 = vmatprep.mubr.f32.mxu0 0.0
      %v873 = vand.u32 %v368, 4294901760
      %874 = vmatmul.mubr.f32.gmra.mxu0 %v873
      %v875 = vpop.f32.mrf.mxu0
      %v876 = vadd.f32 %v607, %v875
      %v877 = vpop.f32.mrf.mxu0
      %878 = vmatprep.mubr.f32.mxu0 0.0
      %v879 = vand.u32 %v371, 4294901760
      %880 = vmatmul.mubr.f32.gmra.mxu0 %v879
      %v881 = vpop.f32.mrf.mxu0
      %v882 = vadd.f32 %v617, %v881
      %v883 = vpop.f32.mrf.mxu0
      %884 = vmatprep.mubr.f32.mxu0 0.0
      %v885 = vand.u32 %v374, 4294901760
      %886 = vmatmul.mubr.f32.gmra.mxu0 %v885
      %v887 = vpop.f32.mrf.mxu0
      %v888 = vadd.f32 %v627, %v887
      %v889 = vpop.f32.mrf.mxu0
      %890 = vmatprep.mubr.f32.mxu0 0.0
      %v891 = vand.u32 %v377, 4294901760
      %892 = vmatmul.mubr.f32.gmra.mxu0 %v891
      %v893 = vpop.f32.mrf.mxu0
      %v894 = vadd.f32 %v637, %v893
      %v895 = vpop.f32.mrf.mxu0
      %896 = vmatprep.mubr.f32.mxu0 0.0
      %v897 = vand.u32 %v380, 4294901760
      %898 = vmatmul.mubr.f32.gmra.mxu0 %v897
      %v899 = vpop.f32.mrf.mxu0
      %v900 = vadd.f32 %v647, %v899
      %v901 = vpop.f32.mrf.mxu0
      %902 = vmatprep.mubr.f32.mxu0 0.0
      %v903 = vand.u32 %v383, 4294901760
      %904 = vmatmul.mubr.f32.gmra.mxu0 %v903
      %v905 = vpop.f32.mrf.mxu0
      %v906 = vadd.f32 %v657, %v905
      %v907 = vpop.f32.mrf.mxu0
      %908 = vmatprep.mubr.f32.mxu0 0.0
      %v909 = vand.u32 %v386, 4294901760
      %910 = vmatmul.mubr.f32.gmra.mxu0 %v909
      %v911 = vpop.f32.mrf.mxu0
      %v912 = vadd.f32 %v667, %v911
      %v913 = vpop.f32.mrf.mxu0
      %914 = vmatprep.mubr.f32.mxu0 0.0
      %v915 = vand.u32 %v389, 4294901760
      %916 = vmatmul.mubr.f32.gmra.mxu0 %v915
      %v917 = vpop.f32.mrf.mxu0
      %v918 = vadd.f32 %v677, %v917
      %v919 = vpop.f32.mrf.mxu0
      %920 = vdwg.mxu0
      %921 = vmatprep.subr.mxu0 0.0
      %v922 = vand.u32 %v437, 4294901760
      %v923 = vsub.f32 %v437, %v922
      %924 = vmatpush1.xpose.msra.mxu0 %v923
      %925 = vmatprep.subr.mxu0 0.0
      %v926 = vand.u32 %v434, 4294901760
      %v927 = vsub.f32 %v434, %v926
      %928 = vmatpush1.xpose.msra.mxu0 %v927
      %929 = vmatprep.subr.mxu0 0.0
      %v930 = vand.u32 %v431, 4294901760
      %v931 = vsub.f32 %v431, %v930
      %932 = vmatpush1.xpose.msra.mxu0 %v931
      %933 = vmatprep.subr.mxu0 0.0
      %v934 = vand.u32 %v428, 4294901760
      %v935 = vsub.f32 %v428, %v934
      %936 = vmatpush1.xpose.msra.mxu0 %v935
      %937 = vmatprep.subr.mxu0 0.0
      %v938 = vand.u32 %v425, 4294901760
      %v939 = vsub.f32 %v425, %v938
      %940 = vmatpush1.xpose.msra.mxu0 %v939
      %941 = vmatprep.subr.mxu0 0.0
      %v942 = vand.u32 %v422, 4294901760
      %v943 = vsub.f32 %v422, %v942
      %944 = vmatpush1.xpose.msra.mxu0 %v943
      %945 = vmatprep.subr.mxu0 0.0
      %v946 = vand.u32 %v419, 4294901760
      %v947 = vsub.f32 %v419, %v946
      %948 = vmatpush1.xpose.msra.mxu0 %v947
      %949 = vmatprep.subr.mxu0 0.0
      %v950 = vand.u32 %v416, 4294901760
      %v951 = vsub.f32 %v416, %v950
      %952 = vmatpush1.xpose.msra.mxu0 %v951
      %953 = vmatprep.subr.mxu0 0.0
      %v954 = vand.u32 %v413, 4294901760
      %v955 = vsub.f32 %v413, %v954
      %956 = vmatpush1.xpose.msra.mxu0 %v955
      %957 = vmatprep.subr.mxu0 0.0
      %v958 = vand.u32 %v410, 4294901760
      %v959 = vsub.f32 %v410, %v958
      %960 = vmatpush1.xpose.msra.mxu0 %v959
      %961 = vmatprep.subr.mxu0 0.0
      %v962 = vand.u32 %v407, 4294901760
      %v963 = vsub.f32 %v407, %v962
      %964 = vmatpush1.xpose.msra.mxu0 %v963
      %965 = vmatprep.subr.mxu0 0.0
      %v966 = vand.u32 %v404, 4294901760
      %v967 = vsub.f32 %v404, %v966
      %968 = vmatpush1.xpose.msra.mxu0 %v967
      %969 = vmatprep.subr.mxu0 0.0
      %v970 = vand.u32 %v401, 4294901760
      %v971 = vsub.f32 %v401, %v970
      %972 = vmatpush1.xpose.msra.mxu0 %v971
      %973 = vmatprep.subr.mxu0 0.0
      %v974 = vand.u32 %v398, 4294901760
      %v975 = vsub.f32 %v398, %v974
      %976 = vmatpush1.xpose.msra.mxu0 %v975
      %977 = vmatprep.subr.mxu0 0.0
      %v978 = vand.u32 %v395, 4294901760
      %v979 = vsub.f32 %v395, %v978
      %980 = vmatpush1.xpose.msra.mxu0 %v979
      %981 = vmatprep.subr.mxu0 0.0
      %v982 = vand.u32 %v392, 4294901760
      %v983 = vsub.f32 %v392, %v982
      %984 = vmatpush1.xpose.msra.mxu0 %v983
      %985 = vmatprep.subr.mxu0 0.0
      %986 = vmatpush2.xpose.msra.mxu0 0.0
      %987 = vmatprep.subr.mxu0 0.0
      %988 = vmatpush2.xpose.msra.mxu0 0.0
      %989 = vmatprep.subr.mxu0 0.0
      %990 = vmatpush2.xpose.msra.mxu0 0.0
      %991 = vmatprep.subr.mxu0 0.0
      %992 = vmatpush2.xpose.msra.mxu0 0.0
      %993 = vmatprep.subr.mxu0 0.0
      %994 = vmatpush2.xpose.msra.mxu0 0.0
      %995 = vmatprep.subr.mxu0 0.0
      %996 = vmatpush2.xpose.msra.mxu0 0.0
      %997 = vmatprep.subr.mxu0 0.0
      %998 = vmatpush2.xpose.msra.mxu0 0.0
      %999 = vmatprep.subr.mxu0 0.0
      %1000 = vmatpush2.xpose.msra.mxu0 0.0
      %1001 = vmatprep.subr.mxu0 0.0
      %1002 = vmatpush2.xpose.msra.mxu0 0.0
      %1003 = vmatprep.subr.mxu0 0.0
      %1004 = vmatpush2.xpose.msra.mxu0 0.0
      %1005 = vmatprep.subr.mxu0 0.0
      %1006 = vmatpush2.xpose.msra.mxu0 0.0
      %1007 = vmatprep.subr.mxu0 0.0
      %1008 = vmatpush2.xpose.msra.mxu0 0.0
      %1009 = vmatprep.subr.mxu0 0.0
      %1010 = vmatpush2.xpose.msra.mxu0 0.0
      %1011 = vmatprep.subr.mxu0 0.0
      %1012 = vmatpush2.xpose.msra.mxu0 0.0
      %1013 = vmatprep.subr.mxu0 0.0
      %1014 = vmatpush2.xpose.msra.mxu0 0.0
      %1015 = vmatprep.subr.mxu0 0.0
      %1016 = vmatpush2.xpose.msra.mxu0 0.0
      %1017 = vmatprep.mubr.f32.mxu0 0.0
      %v1018 = vand.u32 %v344, 4294901760
      %v1019 = vsub.f32 %v344, %v1018
      %1020 = vmatmul.mubr.f32.gmra.mxu0 %v1019
      %v1021 = vpop.f32.mrf.mxu0
      %v1022 = vadd.f32 %v828, %v1021
      %v1023 = vpop.f32.mrf.mxu0
      %1024 = vmatprep.mubr.f32.mxu0 0.0
      %v1025 = vand.u32 %v347, 4294901760
      %v1026 = vsub.f32 %v347, %v1025
      %1027 = vmatmul.mubr.f32.gmra.mxu0 %v1026
      %v1028 = vpop.f32.mrf.mxu0
      %v1029 = vadd.f32 %v834, %v1028
      %v1030 = vpop.f32.mrf.mxu0
      %1031 = vmatprep.mubr.f32.mxu0 0.0
      %v1032 = vand.u32 %v350, 4294901760
      %v1033 = vsub.f32 %v350, %v1032
      %1034 = vmatmul.mubr.f32.gmra.mxu0 %v1033
      %v1035 = vpop.f32.mrf.mxu0
      %v1036 = vadd.f32 %v840, %v1035
      %v1037 = vpop.f32.mrf.mxu0
      %1038 = vmatprep.mubr.f32.mxu0 0.0
      %v1039 = vand.u32 %v353, 4294901760
      %v1040 = vsub.f32 %v353, %v1039
      %1041 = vmatmul.mubr.f32.gmra.mxu0 %v1040
      %v1042 = vpop.f32.mrf.mxu0
      %v1043 = vadd.f32 %v846, %v1042
      %v1044 = vpop.f32.mrf.mxu0
      %1045 = vmatprep.mubr.f32.mxu0 0.0
      %v1046 = vand.u32 %v356, 4294901760
      %v1047 = vsub.f32 %v356, %v1046
      %1048 = vmatmul.mubr.f32.gmra.mxu0 %v1047
      %v1049 = vpop.f32.mrf.mxu0
      %v1050 = vadd.f32 %v852, %v1049
      %v1051 = vpop.f32.mrf.mxu0
      %1052 = vmatprep.mubr.f32.mxu0 0.0
      %v1053 = vand.u32 %v359, 4294901760
      %v1054 = vsub.f32 %v359, %v1053
      %1055 = vmatmul.mubr.f32.gmra.mxu0 %v1054
      %v1056 = vpop.f32.mrf.mxu0
      %v1057 = vadd.f32 %v858, %v1056
      %v1058 = vpop.f32.mrf.mxu0
      %1059 = vmatprep.mubr.f32.mxu0 0.0
      %v1060 = vand.u32 %v362, 4294901760
      %v1061 = vsub.f32 %v362, %v1060
      %1062 = vmatmul.mubr.f32.gmra.mxu0 %v1061
      %v1063 = vpop.f32.mrf.mxu0
      %v1064 = vadd.f32 %v864, %v1063
      %v1065 = vpop.f32.mrf.mxu0
      %1066 = vmatprep.mubr.f32.mxu0 0.0
      %v1067 = vand.u32 %v365, 4294901760
      %v1068 = vsub.f32 %v365, %v1067
      %1069 = vmatmul.mubr.f32.gmra.mxu0 %v1068
      %v1070 = vpop.f32.mrf.mxu0
      %v1071 = vadd.f32 %v870, %v1070
      %v1072 = vpop.f32.mrf.mxu0
      %1073 = vmatprep.mubr.f32.mxu0 0.0
      %v1074 = vand.u32 %v368, 4294901760
      %v1075 = vsub.f32 %v368, %v1074
      %1076 = vmatmul.mubr.f32.gmra.mxu0 %v1075
      %v1077 = vpop.f32.mrf.mxu0
      %v1078 = vadd.f32 %v876, %v1077
      %v1079 = vpop.f32.mrf.mxu0
      %1080 = vmatprep.mubr.f32.mxu0 0.0
      %v1081 = vand.u32 %v371, 4294901760
      %v1082 = vsub.f32 %v371, %v1081
      %1083 = vmatmul.mubr.f32.gmra.mxu0 %v1082
      %v1084 = vpop.f32.mrf.mxu0
      %v1085 = vadd.f32 %v882, %v1084
      %v1086 = vpop.f32.mrf.mxu0
      %1087 = vmatprep.mubr.f32.mxu0 0.0
      %v1088 = vand.u32 %v374, 4294901760
      %v1089 = vsub.f32 %v374, %v1088
      %1090 = vmatmul.mubr.f32.gmra.mxu0 %v1089
      %v1091 = vpop.f32.mrf.mxu0
      %v1092 = vadd.f32 %v888, %v1091
      %v1093 = vpop.f32.mrf.mxu0
      %1094 = vmatprep.mubr.f32.mxu0 0.0
      %v1095 = vand.u32 %v377, 4294901760
      %v1096 = vsub.f32 %v377, %v1095
      %1097 = vmatmul.mubr.f32.gmra.mxu0 %v1096
      %v1098 = vpop.f32.mrf.mxu0
      %v1099 = vadd.f32 %v894, %v1098
      %v1100 = vpop.f32.mrf.mxu0
      %1101 = vmatprep.mubr.f32.mxu0 0.0
      %v1102 = vand.u32 %v380, 4294901760
      %v1103 = vsub.f32 %v380, %v1102
      %1104 = vmatmul.mubr.f32.gmra.mxu0 %v1103
      %v1105 = vpop.f32.mrf.mxu0
      %v1106 = vadd.f32 %v900, %v1105
      %v1107 = vpop.f32.mrf.mxu0
      %1108 = vmatprep.mubr.f32.mxu0 0.0
      %v1109 = vand.u32 %v383, 4294901760
      %v1110 = vsub.f32 %v383, %v1109
      %1111 = vmatmul.mubr.f32.gmra.mxu0 %v1110
      %v1112 = vpop.f32.mrf.mxu0
      %v1113 = vadd.f32 %v906, %v1112
      %v1114 = vpop.f32.mrf.mxu0
      %1115 = vmatprep.mubr.f32.mxu0 0.0
      %v1116 = vand.u32 %v386, 4294901760
      %v1117 = vsub.f32 %v386, %v1116
      %1118 = vmatmul.mubr.f32.gmra.mxu0 %v1117
      %v1119 = vpop.f32.mrf.mxu0
      %v1120 = vadd.f32 %v912, %v1119
      %v1121 = vpop.f32.mrf.mxu0
      %1122 = vmatprep.mubr.f32.mxu0 0.0
      %v1123 = vand.u32 %v389, 4294901760
      %v1124 = vsub.f32 %v389, %v1123
      %1125 = vmatmul.mubr.f32.gmra.mxu0 %v1124
      %v1126 = vpop.f32.mrf.mxu0
      %v1127 = vadd.f32 %v918, %v1126
      %v1128 = vpop.f32.mrf.mxu0
      %1129 = vdwg.mxu0
      %1130 = vmatprep.subr.mxu0 0.0
      %v1131 = vand.u32 %v437, 4294901760
      %1132 = vmatpush1.xpose.msra.mxu0 %v1131
      %1133 = vmatprep.subr.mxu0 0.0
      %v1134 = vand.u32 %v434, 4294901760
      %1135 = vmatpush1.xpose.msra.mxu0 %v1134
      %1136 = vmatprep.subr.mxu0 0.0
      %v1137 = vand.u32 %v431, 4294901760
      %1138 = vmatpush1.xpose.msra.mxu0 %v1137
      %1139 = vmatprep.subr.mxu0 0.0
      %v1140 = vand.u32 %v428, 4294901760
      %1141 = vmatpush1.xpose.msra.mxu0 %v1140
      %1142 = vmatprep.subr.mxu0 0.0
      %v1143 = vand.u32 %v425, 4294901760
      %1144 = vmatpush1.xpose.msra.mxu0 %v1143
      %1145 = vmatprep.subr.mxu0 0.0
      %v1146 = vand.u32 %v422, 4294901760
      %1147 = vmatpush1.xpose.msra.mxu0 %v1146
      %1148 = vmatprep.subr.mxu0 0.0
      %v1149 = vand.u32 %v419, 4294901760
      %1150 = vmatpush1.xpose.msra.mxu0 %v1149
      %1151 = vmatprep.subr.mxu0 0.0
      %v1152 = vand.u32 %v416, 4294901760
      %1153 = vmatpush1.xpose.msra.mxu0 %v1152
      %1154 = vmatprep.subr.mxu0 0.0
      %v1155 = vand.u32 %v413, 4294901760
      %1156 = vmatpush1.xpose.msra.mxu0 %v1155
      %1157 = vmatprep.subr.mxu0 0.0
      %v1158 = vand.u32 %v410, 4294901760
      %1159 = vmatpush1.xpose.msra.mxu0 %v1158
      %1160 = vmatprep.subr.mxu0 0.0
      %v1161 = vand.u32 %v407, 4294901760
      %1162 = vmatpush1.xpose.msra.mxu0 %v1161
      %1163 = vmatprep.subr.mxu0 0.0
      %v1164 = vand.u32 %v404, 4294901760
      %1165 = vmatpush1.xpose.msra.mxu0 %v1164
      %1166 = vmatprep.subr.mxu0 0.0
      %v1167 = vand.u32 %v401, 4294901760
      %1168 = vmatpush1.xpose.msra.mxu0 %v1167
      %1169 = vmatprep.subr.mxu0 0.0
      %v1170 = vand.u32 %v398, 4294901760
      %1171 = vmatpush1.xpose.msra.mxu0 %v1170
      %1172 = vmatprep.subr.mxu0 0.0
      %v1173 = vand.u32 %v395, 4294901760
      %1174 = vmatpush1.xpose.msra.mxu0 %v1173
      %1175 = vmatprep.subr.mxu0 0.0
      %v1176 = vand.u32 %v392, 4294901760
      %1177 = vmatpush1.xpose.msra.mxu0 %v1176
      %1178 = vmatprep.subr.mxu0 0.0
      %1179 = vmatpush2.xpose.msra.mxu0 0.0
      %1180 = vmatprep.subr.mxu0 0.0
      %1181 = vmatpush2.xpose.msra.mxu0 0.0
      %1182 = vmatprep.subr.mxu0 0.0
      %1183 = vmatpush2.xpose.msra.mxu0 0.0
      %1184 = vmatprep.subr.mxu0 0.0
      %1185 = vmatpush2.xpose.msra.mxu0 0.0
      %1186 = vmatprep.subr.mxu0 0.0
      %1187 = vmatpush2.xpose.msra.mxu0 0.0
      %1188 = vmatprep.subr.mxu0 0.0
      %1189 = vmatpush2.xpose.msra.mxu0 0.0
      %1190 = vmatprep.subr.mxu0 0.0
      %1191 = vmatpush2.xpose.msra.mxu0 0.0
      %1192 = vmatprep.subr.mxu0 0.0
      %1193 = vmatpush2.xpose.msra.mxu0 0.0
      %1194 = vmatprep.subr.mxu0 0.0
      %1195 = vmatpush2.xpose.msra.mxu0 0.0
      %1196 = vmatprep.subr.mxu0 0.0
      %1197 = vmatpush2.xpose.msra.mxu0 0.0
      %1198 = vmatprep.subr.mxu0 0.0
      %1199 = vmatpush2.xpose.msra.mxu0 0.0
      %1200 = vmatprep.subr.mxu0 0.0
      %1201 = vmatpush2.xpose.msra.mxu0 0.0
      %1202 = vmatprep.subr.mxu0 0.0
      %1203 = vmatpush2.xpose.msra.mxu0 0.0
      %1204 = vmatprep.subr.mxu0 0.0
      %1205 = vmatpush2.xpose.msra.mxu0 0.0
      %1206 = vmatprep.subr.mxu0 0.0
      %1207 = vmatpush2.xpose.msra.mxu0 0.0
      %1208 = vmatprep.subr.mxu0 0.0
      %1209 = vmatpush2.xpose.msra.mxu0 0.0
      %1210 = vmatprep.mubr.f32.mxu0 0.0
      %v1211 = vand.u32 %v344, 4294901760
      %v1212 = vsub.f32 %v344, %v1211
      %v1213 = vand.u32 %v1212, 4294901760
      %1214 = vmatmul.mubr.f32.gmra.mxu0 %v1213
      %v1215 = vpop.f32.mrf.mxu0
      %v1216 = vadd.f32 %v1022, %v1215
      %v1217 = vpop.f32.mrf.mxu0
      %1218 = vmatprep.mubr.f32.mxu0 0.0
      %v1219 = vand.u32 %v347, 4294901760
      %v1220 = vsub.f32 %v347, %v1219
      %v1221 = vand.u32 %v1220, 4294901760
      %1222 = vmatmul.mubr.f32.gmra.mxu0 %v1221
      %v1223 = vpop.f32.mrf.mxu0
      %v1224 = vadd.f32 %v1029, %v1223
      %v1225 = vpop.f32.mrf.mxu0
      %1226 = vmatprep.mubr.f32.mxu0 0.0
      %v1227 = vand.u32 %v350, 4294901760
      %v1228 = vsub.f32 %v350, %v1227
      %v1229 = vand.u32 %v1228, 4294901760
      %1230 = vmatmul.mubr.f32.gmra.mxu0 %v1229
      %v1231 = vpop.f32.mrf.mxu0
      %v1232 = vadd.f32 %v1036, %v1231
      %v1233 = vpop.f32.mrf.mxu0
      %1234 = vmatprep.mubr.f32.mxu0 0.0
      %v1235 = vand.u32 %v353, 4294901760
      %v1236 = vsub.f32 %v353, %v1235
      %v1237 = vand.u32 %v1236, 4294901760
      %1238 = vmatmul.mubr.f32.gmra.mxu0 %v1237
      %v1239 = vpop.f32.mrf.mxu0
      %v1240 = vadd.f32 %v1043, %v1239
      %v1241 = vpop.f32.mrf.mxu0
      %1242 = vmatprep.mubr.f32.mxu0 0.0
      %v1243 = vand.u32 %v356, 4294901760
      %v1244 = vsub.f32 %v356, %v1243
      %v1245 = vand.u32 %v1244, 4294901760
      %1246 = vmatmul.mubr.f32.gmra.mxu0 %v1245
      %v1247 = vpop.f32.mrf.mxu0
      %v1248 = vadd.f32 %v1050, %v1247
      %v1249 = vpop.f32.mrf.mxu0
      %1250 = vmatprep.mubr.f32.mxu0 0.0
      %v1251 = vand.u32 %v359, 4294901760
      %v1252 = vsub.f32 %v359, %v1251
      %v1253 = vand.u32 %v1252, 4294901760
      %1254 = vmatmul.mubr.f32.gmra.mxu0 %v1253
      %v1255 = vpop.f32.mrf.mxu0
      %v1256 = vadd.f32 %v1057, %v1255
      %v1257 = vpop.f32.mrf.mxu0
      %1258 = vmatprep.mubr.f32.mxu0 0.0
      %v1259 = vand.u32 %v362, 4294901760
      %v1260 = vsub.f32 %v362, %v1259
      %v1261 = vand.u32 %v1260, 4294901760
      %1262 = vmatmul.mubr.f32.gmra.mxu0 %v1261
      %v1263 = vpop.f32.mrf.mxu0
      %v1264 = vadd.f32 %v1064, %v1263
      %v1265 = vpop.f32.mrf.mxu0
      %1266 = vmatprep.mubr.f32.mxu0 0.0
      %v1267 = vand.u32 %v365, 4294901760
      %v1268 = vsub.f32 %v365, %v1267
      %v1269 = vand.u32 %v1268, 4294901760
      %1270 = vmatmul.mubr.f32.gmra.mxu0 %v1269
      %v1271 = vpop.f32.mrf.mxu0
      %v1272 = vadd.f32 %v1071, %v1271
      %v1273 = vpop.f32.mrf.mxu0
      %1274 = vmatprep.mubr.f32.mxu0 0.0
      %v1275 = vand.u32 %v368, 4294901760
      %v1276 = vsub.f32 %v368, %v1275
      %v1277 = vand.u32 %v1276, 4294901760
      %1278 = vmatmul.mubr.f32.gmra.mxu0 %v1277
      %v1279 = vpop.f32.mrf.mxu0
      %v1280 = vadd.f32 %v1078, %v1279
      %v1281 = vpop.f32.mrf.mxu0
      %1282 = vmatprep.mubr.f32.mxu0 0.0
      %v1283 = vand.u32 %v371, 4294901760
      %v1284 = vsub.f32 %v371, %v1283
      %v1285 = vand.u32 %v1284, 4294901760
      %1286 = vmatmul.mubr.f32.gmra.mxu0 %v1285
      %v1287 = vpop.f32.mrf.mxu0
      %v1288 = vadd.f32 %v1085, %v1287
      %v1289 = vpop.f32.mrf.mxu0
      %1290 = vmatprep.mubr.f32.mxu0 0.0
      %v1291 = vand.u32 %v374, 4294901760
      %v1292 = vsub.f32 %v374, %v1291
      %v1293 = vand.u32 %v1292, 4294901760
      %1294 = vmatmul.mubr.f32.gmra.mxu0 %v1293
      %v1295 = vpop.f32.mrf.mxu0
      %v1296 = vadd.f32 %v1092, %v1295
      %v1297 = vpop.f32.mrf.mxu0
      %1298 = vmatprep.mubr.f32.mxu0 0.0
      %v1299 = vand.u32 %v377, 4294901760
      %v1300 = vsub.f32 %v377, %v1299
      %v1301 = vand.u32 %v1300, 4294901760
      %1302 = vmatmul.mubr.f32.gmra.mxu0 %v1301
      %v1303 = vpop.f32.mrf.mxu0
      %v1304 = vadd.f32 %v1099, %v1303
      %v1305 = vpop.f32.mrf.mxu0
      %1306 = vmatprep.mubr.f32.mxu0 0.0
      %v1307 = vand.u32 %v380, 4294901760
      %v1308 = vsub.f32 %v380, %v1307
      %v1309 = vand.u32 %v1308, 4294901760
      %1310 = vmatmul.mubr.f32.gmra.mxu0 %v1309
      %v1311 = vpop.f32.mrf.mxu0
      %v1312 = vadd.f32 %v1106, %v1311
      %v1313 = vpop.f32.mrf.mxu0
      %1314 = vmatprep.mubr.f32.mxu0 0.0
      %v1315 = vand.u32 %v383, 4294901760
      %v1316 = vsub.f32 %v383, %v1315
      %v1317 = vand.u32 %v1316, 4294901760
      %1318 = vmatmul.mubr.f32.gmra.mxu0 %v1317
      %v1319 = vpop.f32.mrf.mxu0
      %v1320 = vadd.f32 %v1113, %v1319
      %v1321 = vpop.f32.mrf.mxu0
      %1322 = vmatprep.mubr.f32.mxu0 0.0
      %v1323 = vand.u32 %v386, 4294901760
      %v1324 = vsub.f32 %v386, %v1323
      %v1325 = vand.u32 %v1324, 4294901760
      %1326 = vmatmul.mubr.f32.gmra.mxu0 %v1325
      %v1327 = vpop.f32.mrf.mxu0
      %v1328 = vadd.f32 %v1120, %v1327
      %v1329 = vpop.f32.mrf.mxu0
      %1330 = vmatprep.mubr.f32.mxu0 0.0
      %v1331 = vand.u32 %v389, 4294901760
      %v1332 = vsub.f32 %v389, %v1331
      %v1333 = vand.u32 %v1332, 4294901760
      %1334 = vmatmul.mubr.f32.gmra.mxu0 %v1333
      %v1335 = vpop.f32.mrf.mxu0
      %v1336 = vadd.f32 %v1127, %v1335
      %v1337 = vpop.f32.mrf.mxu0
      %1338 = vdwg.mxu0
      %1339 = vmatprep.subr.mxu0 0.0
      %v1340 = vand.u32 %v437, 4294901760
      %v1341 = vsub.f32 %v437, %v1340
      %v1342 = vand.u32 %v1341, 4294901760
      %1343 = vmatpush1.xpose.msra.mxu0 %v1342
      %1344 = vmatprep.subr.mxu0 0.0
      %v1345 = vand.u32 %v434, 4294901760
      %v1346 = vsub.f32 %v434, %v1345
      %v1347 = vand.u32 %v1346, 4294901760
      %1348 = vmatpush1.xpose.msra.mxu0 %v1347
      %1349 = vmatprep.subr.mxu0 0.0
      %v1350 = vand.u32 %v431, 4294901760
      %v1351 = vsub.f32 %v431, %v1350
      %v1352 = vand.u32 %v1351, 4294901760
      %1353 = vmatpush1.xpose.msra.mxu0 %v1352
      %1354 = vmatprep.subr.mxu0 0.0
      %v1355 = vand.u32 %v428, 4294901760
      %v1356 = vsub.f32 %v428, %v1355
      %v1357 = vand.u32 %v1356, 4294901760
      %1358 = vmatpush1.xpose.msra.mxu0 %v1357
      %1359 = vmatprep.subr.mxu0 0.0
      %v1360 = vand.u32 %v425, 4294901760
      %v1361 = vsub.f32 %v425, %v1360
      %v1362 = vand.u32 %v1361, 4294901760
      %1363 = vmatpush1.xpose.msra.mxu0 %v1362
      %1364 = vmatprep.subr.mxu0 0.0
      %v1365 = vand.u32 %v422, 4294901760
      %v1366 = vsub.f32 %v422, %v1365
      %v1367 = vand.u32 %v1366, 4294901760
      %1368 = vmatpush1.xpose.msra.mxu0 %v1367
      %1369 = vmatprep.subr.mxu0 0.0
      %v1370 = vand.u32 %v419, 4294901760
      %v1371 = vsub.f32 %v419, %v1370
      %v1372 = vand.u32 %v1371, 4294901760
      %1373 = vmatpush1.xpose.msra.mxu0 %v1372
      %1374 = vmatprep.subr.mxu0 0.0
      %v1375 = vand.u32 %v416, 4294901760
      %v1376 = vsub.f32 %v416, %v1375
      %v1377 = vand.u32 %v1376, 4294901760
      %1378 = vmatpush1.xpose.msra.mxu0 %v1377
      %1379 = vmatprep.subr.mxu0 0.0
      %v1380 = vand.u32 %v413, 4294901760
      %v1381 = vsub.f32 %v413, %v1380
      %v1382 = vand.u32 %v1381, 4294901760
      %1383 = vmatpush1.xpose.msra.mxu0 %v1382
      %1384 = vmatprep.subr.mxu0 0.0
      %v1385 = vand.u32 %v410, 4294901760
      %v1386 = vsub.f32 %v410, %v1385
      %v1387 = vand.u32 %v1386, 4294901760
      %1388 = vmatpush1.xpose.msra.mxu0 %v1387
      %1389 = vmatprep.subr.mxu0 0.0
      %v1390 = vand.u32 %v407, 4294901760
      %v1391 = vsub.f32 %v407, %v1390
      %v1392 = vand.u32 %v1391, 4294901760
      %1393 = vmatpush1.xpose.msra.mxu0 %v1392
      %1394 = vmatprep.subr.mxu0 0.0
      %v1395 = vand.u32 %v404, 4294901760
      %v1396 = vsub.f32 %v404, %v1395
      %v1397 = vand.u32 %v1396, 4294901760
      %1398 = vmatpush1.xpose.msra.mxu0 %v1397
      %1399 = vmatprep.subr.mxu0 0.0
      %v1400 = vand.u32 %v401, 4294901760
      %v1401 = vsub.f32 %v401, %v1400
      %v1402 = vand.u32 %v1401, 4294901760
      %1403 = vmatpush1.xpose.msra.mxu0 %v1402
      %1404 = vmatprep.subr.mxu0 0.0
      %v1405 = vand.u32 %v398, 4294901760
      %v1406 = vsub.f32 %v398, %v1405
      %v1407 = vand.u32 %v1406, 4294901760
      %1408 = vmatpush1.xpose.msra.mxu0 %v1407
      %1409 = vmatprep.subr.mxu0 0.0
      %v1410 = vand.u32 %v395, 4294901760
      %v1411 = vsub.f32 %v395, %v1410
      %v1412 = vand.u32 %v1411, 4294901760
      %1413 = vmatpush1.xpose.msra.mxu0 %v1412
      %1414 = vmatprep.subr.mxu0 0.0
      %v1415 = vand.u32 %v392, 4294901760
      %v1416 = vsub.f32 %v392, %v1415
      %v1417 = vand.u32 %v1416, 4294901760
      %1418 = vmatpush1.xpose.msra.mxu0 %v1417
      %1419 = vmatprep.subr.mxu0 0.0
      %1420 = vmatpush2.xpose.msra.mxu0 0.0
      %1421 = vmatprep.subr.mxu0 0.0
      %1422 = vmatpush2.xpose.msra.mxu0 0.0
      %1423 = vmatprep.subr.mxu0 0.0
      %1424 = vmatpush2.xpose.msra.mxu0 0.0
      %1425 = vmatprep.subr.mxu0 0.0
      %1426 = vmatpush2.xpose.msra.mxu0 0.0
      %1427 = vmatprep.subr.mxu0 0.0
      %1428 = vmatpush2.xpose.msra.mxu0 0.0
      %1429 = vmatprep.subr.mxu0 0.0
      %1430 = vmatpush2.xpose.msra.mxu0 0.0
      %1431 = vmatprep.subr.mxu0 0.0
      %1432 = vmatpush2.xpose.msra.mxu0 0.0
      %1433 = vmatprep.subr.mxu0 0.0
      %1434 = vmatpush2.xpose.msra.mxu0 0.0
      %1435 = vmatprep.subr.mxu0 0.0
      %1436 = vmatpush2.xpose.msra.mxu0 0.0
      %1437 = vmatprep.subr.mxu0 0.0
      %1438 = vmatpush2.xpose.msra.mxu0 0.0
      %1439 = vmatprep.subr.mxu0 0.0
      %1440 = vmatpush2.xpose.msra.mxu0 0.0
      %1441 = vmatprep.subr.mxu0 0.0
      %1442 = vmatpush2.xpose.msra.mxu0 0.0
      %1443 = vmatprep.subr.mxu0 0.0
      %1444 = vmatpush2.xpose.msra.mxu0 0.0
      %1445 = vmatprep.subr.mxu0 0.0
      %1446 = vmatpush2.xpose.msra.mxu0 0.0
      %1447 = vmatprep.subr.mxu0 0.0
      %1448 = vmatpush2.xpose.msra.mxu0 0.0
      %1449 = vmatprep.subr.mxu0 0.0
      %1450 = vmatpush2.xpose.msra.mxu0 0.0
      %1451 = vmatprep.mubr.f32.mxu0 0.0
      %v1452 = vand.u32 %v344, 4294901760
      %1453 = vmatmul.mubr.f32.gmra.mxu0 %v1452
      %v1454 = vpop.f32.mrf.mxu0
      %v1455 = vadd.f32 %v1216, %v1454
      %v1456 = vpop.f32.mrf.mxu0
      %1457 = vmatprep.mubr.f32.mxu0 0.0
      %v1458 = vand.u32 %v347, 4294901760
      %1459 = vmatmul.mubr.f32.gmra.mxu0 %v1458
      %v1460 = vpop.f32.mrf.mxu0
      %v1461 = vadd.f32 %v1224, %v1460
      %v1462 = vpop.f32.mrf.mxu0
      %1463 = vmatprep.mubr.f32.mxu0 0.0
      %v1464 = vand.u32 %v350, 4294901760
      %1465 = vmatmul.mubr.f32.gmra.mxu0 %v1464
      %v1466 = vpop.f32.mrf.mxu0
      %v1467 = vadd.f32 %v1232, %v1466
      %v1468 = vpop.f32.mrf.mxu0
      %1469 = vmatprep.mubr.f32.mxu0 0.0
      %v1470 = vand.u32 %v353, 4294901760
      %1471 = vmatmul.mubr.f32.gmra.mxu0 %v1470
      %v1472 = vpop.f32.mrf.mxu0
      %v1473 = vadd.f32 %v1240, %v1472
      %v1474 = vpop.f32.mrf.mxu0
      %1475 = vmatprep.mubr.f32.mxu0 0.0
      %v1476 = vand.u32 %v356, 4294901760
      %1477 = vmatmul.mubr.f32.gmra.mxu0 %v1476
      %v1478 = vpop.f32.mrf.mxu0
      %v1479 = vadd.f32 %v1248, %v1478
      %v1480 = vpop.f32.mrf.mxu0
      %1481 = vmatprep.mubr.f32.mxu0 0.0
      %v1482 = vand.u32 %v359, 4294901760
      %1483 = vmatmul.mubr.f32.gmra.mxu0 %v1482
      %v1484 = vpop.f32.mrf.mxu0
      %v1485 = vadd.f32 %v1256, %v1484
      %v1486 = vpop.f32.mrf.mxu0
      %1487 = vmatprep.mubr.f32.mxu0 0.0
      %v1488 = vand.u32 %v362, 4294901760
      %1489 = vmatmul.mubr.f32.gmra.mxu0 %v1488
      %v1490 = vpop.f32.mrf.mxu0
      %v1491 = vadd.f32 %v1264, %v1490
      %v1492 = vpop.f32.mrf.mxu0
      %1493 = vmatprep.mubr.f32.mxu0 0.0
      %v1494 = vand.u32 %v365, 4294901760
      %1495 = vmatmul.mubr.f32.gmra.mxu0 %v1494
      %v1496 = vpop.f32.mrf.mxu0
      %v1497 = vadd.f32 %v1272, %v1496
      %v1498 = vpop.f32.mrf.mxu0
      %1499 = vmatprep.mubr.f32.mxu0 0.0
      %v1500 = vand.u32 %v368, 4294901760
      %1501 = vmatmul.mubr.f32.gmra.mxu0 %v1500
      %v1502 = vpop.f32.mrf.mxu0
      %v1503 = vadd.f32 %v1280, %v1502
      %v1504 = vpop.f32.mrf.mxu0
      %1505 = vmatprep.mubr.f32.mxu0 0.0
      %v1506 = vand.u32 %v371, 4294901760
      %1507 = vmatmul.mubr.f32.gmra.mxu0 %v1506
      %v1508 = vpop.f32.mrf.mxu0
      %v1509 = vadd.f32 %v1288, %v1508
      %v1510 = vpop.f32.mrf.mxu0
      %1511 = vmatprep.mubr.f32.mxu0 0.0
      %v1512 = vand.u32 %v374, 4294901760
      %1513 = vmatmul.mubr.f32.gmra.mxu0 %v1512
      %v1514 = vpop.f32.mrf.mxu0
      %v1515 = vadd.f32 %v1296, %v1514
      %v1516 = vpop.f32.mrf.mxu0
      %1517 = vmatprep.mubr.f32.mxu0 0.0
      %v1518 = vand.u32 %v377, 4294901760
      %1519 = vmatmul.mubr.f32.gmra.mxu0 %v1518
      %v1520 = vpop.f32.mrf.mxu0
      %v1521 = vadd.f32 %v1304, %v1520
      %v1522 = vpop.f32.mrf.mxu0
      %1523 = vmatprep.mubr.f32.mxu0 0.0
      %v1524 = vand.u32 %v380, 4294901760
      %1525 = vmatmul.mubr.f32.gmra.mxu0 %v1524
      %v1526 = vpop.f32.mrf.mxu0
      %v1527 = vadd.f32 %v1312, %v1526
      %v1528 = vpop.f32.mrf.mxu0
      %1529 = vmatprep.mubr.f32.mxu0 0.0
      %v1530 = vand.u32 %v383, 4294901760
      %1531 = vmatmul.mubr.f32.gmra.mxu0 %v1530
      %v1532 = vpop.f32.mrf.mxu0
      %v1533 = vadd.f32 %v1320, %v1532
      %v1534 = vpop.f32.mrf.mxu0
      %1535 = vmatprep.mubr.f32.mxu0 0.0
      %v1536 = vand.u32 %v386, 4294901760
      %1537 = vmatmul.mubr.f32.gmra.mxu0 %v1536
      %v1538 = vpop.f32.mrf.mxu0
      %v1539 = vadd.f32 %v1328, %v1538
      %v1540 = vpop.f32.mrf.mxu0
      %1541 = vmatprep.mubr.f32.mxu0 0.0
      %v1542 = vand.u32 %v389, 4294901760
      %1543 = vmatmul.mubr.f32.gmra.mxu0 %v1542
      %v1544 = vpop.f32.mrf.mxu0
      %v1545 = vadd.f32 %v1336, %v1544
      %v1546 = vpop.f32.mrf.mxu0
      %1547 = vdwg.mxu0
      %1548 = vmatprep.subr.mxu0 0.0
      %v1549 = vand.u32 %v437, 4294901760
      %1550 = vmatpush1.xpose.msra.mxu0 %v1549
      %1551 = vmatprep.subr.mxu0 0.0
      %v1552 = vand.u32 %v434, 4294901760
      %1553 = vmatpush1.xpose.msra.mxu0 %v1552
      %1554 = vmatprep.subr.mxu0 0.0
      %v1555 = vand.u32 %v431, 4294901760
      %1556 = vmatpush1.xpose.msra.mxu0 %v1555
      %1557 = vmatprep.subr.mxu0 0.0
      %v1558 = vand.u32 %v428, 4294901760
      %1559 = vmatpush1.xpose.msra.mxu0 %v1558
      %1560 = vmatprep.subr.mxu0 0.0
      %v1561 = vand.u32 %v425, 4294901760
      %1562 = vmatpush1.xpose.msra.mxu0 %v1561
      %1563 = vmatprep.subr.mxu0 0.0
      %v1564 = vand.u32 %v422, 4294901760
      %1565 = vmatpush1.xpose.msra.mxu0 %v1564
      %1566 = vmatprep.subr.mxu0 0.0
      %v1567 = vand.u32 %v419, 4294901760
      %1568 = vmatpush1.xpose.msra.mxu0 %v1567
      %1569 = vmatprep.subr.mxu0 0.0
      %v1570 = vand.u32 %v416, 4294901760
      %1571 = vmatpush1.xpose.msra.mxu0 %v1570
      %1572 = vmatprep.subr.mxu0 0.0
      %v1573 = vand.u32 %v413, 4294901760
      %1574 = vmatpush1.xpose.msra.mxu0 %v1573
      %1575 = vmatprep.subr.mxu0 0.0
      %v1576 = vand.u32 %v410, 4294901760
      %1577 = vmatpush1.xpose.msra.mxu0 %v1576
      %1578 = vmatprep.subr.mxu0 0.0
      %v1579 = vand.u32 %v407, 4294901760
      %1580 = vmatpush1.xpose.msra.mxu0 %v1579
      %1581 = vmatprep.subr.mxu0 0.0
      %v1582 = vand.u32 %v404, 4294901760
      %1583 = vmatpush1.xpose.msra.mxu0 %v1582
      %1584 = vmatprep.subr.mxu0 0.0
      %v1585 = vand.u32 %v401, 4294901760
      %1586 = vmatpush1.xpose.msra.mxu0 %v1585
      %1587 = vmatprep.subr.mxu0 0.0
      %v1588 = vand.u32 %v398, 4294901760
      %1589 = vmatpush1.xpose.msra.mxu0 %v1588
      %1590 = vmatprep.subr.mxu0 0.0
      %v1591 = vand.u32 %v395, 4294901760
      %1592 = vmatpush1.xpose.msra.mxu0 %v1591
      %1593 = vmatprep.subr.mxu0 0.0
      %v1594 = vand.u32 %v392, 4294901760
      %1595 = vmatpush1.xpose.msra.mxu0 %v1594
      %1596 = vmatprep.subr.mxu0 0.0
      %1597 = vmatpush2.xpose.msra.mxu0 0.0
      %1598 = vmatprep.subr.mxu0 0.0
      %1599 = vmatpush2.xpose.msra.mxu0 0.0
      %1600 = vmatprep.subr.mxu0 0.0
      %1601 = vmatpush2.xpose.msra.mxu0 0.0
      %1602 = vmatprep.subr.mxu0 0.0
      %1603 = vmatpush2.xpose.msra.mxu0 0.0
      %1604 = vmatprep.subr.mxu0 0.0
      %1605 = vmatpush2.xpose.msra.mxu0 0.0
      %1606 = vmatprep.subr.mxu0 0.0
      %1607 = vmatpush2.xpose.msra.mxu0 0.0
      %1608 = vmatprep.subr.mxu0 0.0
      %1609 = vmatpush2.xpose.msra.mxu0 0.0
      %1610 = vmatprep.subr.mxu0 0.0
      %1611 = vmatpush2.xpose.msra.mxu0 0.0
      %1612 = vmatprep.subr.mxu0 0.0
      %1613 = vmatpush2.xpose.msra.mxu0 0.0
      %1614 = vmatprep.subr.mxu0 0.0
      %1615 = vmatpush2.xpose.msra.mxu0 0.0
      %1616 = vmatprep.subr.mxu0 0.0
      %1617 = vmatpush2.xpose.msra.mxu0 0.0
      %1618 = vmatprep.subr.mxu0 0.0
      %1619 = vmatpush2.xpose.msra.mxu0 0.0
      %1620 = vmatprep.subr.mxu0 0.0
      %1621 = vmatpush2.xpose.msra.mxu0 0.0
      %1622 = vmatprep.subr.mxu0 0.0
      %1623 = vmatpush2.xpose.msra.mxu0 0.0
      %1624 = vmatprep.subr.mxu0 0.0
      %1625 = vmatpush2.xpose.msra.mxu0 0.0
      %1626 = vmatprep.subr.mxu0 0.0
      %1627 = vmatpush2.xpose.msra.mxu0 0.0
      %1628 = vmatprep.mubr.f32.mxu0 0.0
      %v1629 = vand.u32 %v344, 4294901760
      %1630 = vmatmul.mubr.f32.gmra.mxu0 %v1629
      %v1631 = vpop.f32.mrf.mxu0
      %v1632 = vadd.f32 %v1455, %v1631
      %v1633 = vpop.f32.mrf.mxu0
      %1634 = vmatprep.mubr.f32.mxu0 0.0
      %v1635 = vand.u32 %v347, 4294901760
      %1636 = vmatmul.mubr.f32.gmra.mxu0 %v1635
      %v1637 = vpop.f32.mrf.mxu0
      %v1638 = vadd.f32 %v1461, %v1637
      %v1639 = vpop.f32.mrf.mxu0
      %1640 = vmatprep.mubr.f32.mxu0 0.0
      %v1641 = vand.u32 %v350, 4294901760
      %1642 = vmatmul.mubr.f32.gmra.mxu0 %v1641
      %v1643 = vpop.f32.mrf.mxu0
      %v1644 = vadd.f32 %v1467, %v1643
      %v1645 = vpop.f32.mrf.mxu0
      %1646 = vmatprep.mubr.f32.mxu0 0.0
      %v1647 = vand.u32 %v353, 4294901760
      %1648 = vmatmul.mubr.f32.gmra.mxu0 %v1647
      %v1649 = vpop.f32.mrf.mxu0
      %v1650 = vadd.f32 %v1473, %v1649
      %v1651 = vpop.f32.mrf.mxu0
      %1652 = vmatprep.mubr.f32.mxu0 0.0
      %v1653 = vand.u32 %v356, 4294901760
      %1654 = vmatmul.mubr.f32.gmra.mxu0 %v1653
      %v1655 = vpop.f32.mrf.mxu0
      %v1656 = vadd.f32 %v1479, %v1655
      %v1657 = vpop.f32.mrf.mxu0
      %1658 = vmatprep.mubr.f32.mxu0 0.0
      %v1659 = vand.u32 %v359, 4294901760
      %1660 = vmatmul.mubr.f32.gmra.mxu0 %v1659
      %v1661 = vpop.f32.mrf.mxu0
      %v1662 = vadd.f32 %v1485, %v1661
      %v1663 = vpop.f32.mrf.mxu0
      %1664 = vmatprep.mubr.f32.mxu0 0.0
      %v1665 = vand.u32 %v362, 4294901760
      %1666 = vmatmul.mubr.f32.gmra.mxu0 %v1665
      %v1667 = vpop.f32.mrf.mxu0
      %v1668 = vadd.f32 %v1491, %v1667
      %v1669 = vpop.f32.mrf.mxu0
      %1670 = vmatprep.mubr.f32.mxu0 0.0
      %v1671 = vand.u32 %v365, 4294901760
      %1672 = vmatmul.mubr.f32.gmra.mxu0 %v1671
      %v1673 = vpop.f32.mrf.mxu0
      %v1674 = vadd.f32 %v1497, %v1673
      %v1675 = vpop.f32.mrf.mxu0
      %1676 = vmatprep.mubr.f32.mxu0 0.0
      %v1677 = vand.u32 %v368, 4294901760
      %1678 = vmatmul.mubr.f32.gmra.mxu0 %v1677
      %v1679 = vpop.f32.mrf.mxu0
      %v1680 = vadd.f32 %v1503, %v1679
      %v1681 = vpop.f32.mrf.mxu0
      %1682 = vmatprep.mubr.f32.mxu0 0.0
      %v1683 = vand.u32 %v371, 4294901760
      %1684 = vmatmul.mubr.f32.gmra.mxu0 %v1683
      %v1685 = vpop.f32.mrf.mxu0
      %v1686 = vadd.f32 %v1509, %v1685
      %v1687 = vpop.f32.mrf.mxu0
      %1688 = vmatprep.mubr.f32.mxu0 0.0
      %v1689 = vand.u32 %v374, 4294901760
      %1690 = vmatmul.mubr.f32.gmra.mxu0 %v1689
      %v1691 = vpop.f32.mrf.mxu0
      %v1692 = vadd.f32 %v1515, %v1691
      %v1693 = vpop.f32.mrf.mxu0
      %1694 = vmatprep.mubr.f32.mxu0 0.0
      %v1695 = vand.u32 %v377, 4294901760
      %1696 = vmatmul.mubr.f32.gmra.mxu0 %v1695
      %v1697 = vpop.f32.mrf.mxu0
      %v1698 = vadd.f32 %v1521, %v1697
      %v1699 = vpop.f32.mrf.mxu0
      %1700 = vmatprep.mubr.f32.mxu0 0.0
      %v1701 = vand.u32 %v380, 4294901760
      %1702 = vmatmul.mubr.f32.gmra.mxu0 %v1701
      %v1703 = vpop.f32.mrf.mxu0
      %v1704 = vadd.f32 %v1527, %v1703
      %v1705 = vpop.f32.mrf.mxu0
      %1706 = vmatprep.mubr.f32.mxu0 0.0
      %v1707 = vand.u32 %v383, 4294901760
      %1708 = vmatmul.mubr.f32.gmra.mxu0 %v1707
      %v1709 = vpop.f32.mrf.mxu0
      %v1710 = vadd.f32 %v1533, %v1709
      %v1711 = vpop.f32.mrf.mxu0
      %1712 = vmatprep.mubr.f32.mxu0 0.0
      %v1713 = vand.u32 %v386, 4294901760
      %1714 = vmatmul.mubr.f32.gmra.mxu0 %v1713
      %v1715 = vpop.f32.mrf.mxu0
      %v1716 = vadd.f32 %v1539, %v1715
      %v1717 = vpop.f32.mrf.mxu0
      %1718 = vmatprep.mubr.f32.mxu0 0.0
      %v1719 = vand.u32 %v389, 4294901760
      %1720 = vmatmul.mubr.f32.gmra.mxu0 %v1719
      %v1721 = vpop.f32.mrf.mxu0
      %v1722 = vadd.f32 %v1545, %v1721
      %v1723 = vpop.f32.mrf.mxu0
      %1724 = vdwg.mxu0
      %v1725 = vld [vmem:[%s262] sm:$0xff]
      %v1726 = vld [vmem:[%s262 + $0x8] sm:$0xff]
      %v1727 = vld [vmem:[%s262 + $0x10] sm:$0xff]
      %v1728 = vld [vmem:[%s262 + $0x18] sm:$0xff]
      %v1729 = vld [vmem:[%s262 + $0x20] sm:$0xff]
      %v1730 = vld [vmem:[%s262 + $0x28] sm:$0xff]
      %v1731 = vld [vmem:[%s262 + $0x30] sm:$0xff]
      %v1732 = vld [vmem:[%s262 + $0x38] sm:$0xff]
      %v1733 = vld [vmem:[%s262 + $0x40] sm:$0xff]
      %v1734 = vld [vmem:[%s262 + $0x48] sm:$0xff]
      %v1735 = vld [vmem:[%s262 + $0x50] sm:$0xff]
      %v1736 = vld [vmem:[%s262 + $0x58] sm:$0xff]
      %v1737 = vld [vmem:[%s262 + $0x60] sm:$0xff]
      %v1738 = vld [vmem:[%s262 + $0x68] sm:$0xff]
      %v1739 = vld [vmem:[%s262 + $0x70] sm:$0xff]
      %v1740 = vld [vmem:[%s262 + $0x78] sm:$0xff]
      %v1741 = vld [vmem:[%s266] sm:$0x1]
      %1742 = vset.pattern.permute.xlu0 0
      %1743 = vperm.xlu0 %1742, %v1725
      %v1744 = vpop.permute.xlu0 %1743
      %1745 = vset.pattern.permute.xlu0 0
      %1746 = vperm.xlu0 %1745, %v1726
      %v1747 = vpop.permute.xlu0 %1746
      %1748 = vset.pattern.permute.xlu0 0
      %1749 = vperm.xlu0 %1748, %v1727
      %v1750 = vpop.permute.xlu0 %1749
      %1751 = vset.pattern.permute.xlu0 0
      %1752 = vperm.xlu0 %1751, %v1728
      %v1753 = vpop.permute.xlu0 %1752
      %1754 = vset.pattern.permute.xlu0 0
      %1755 = vperm.xlu0 %1754, %v1729
      %v1756 = vpop.permute.xlu0 %1755
      %1757 = vset.pattern.permute.xlu0 0
      %1758 = vperm.xlu0 %1757, %v1730
      %v1759 = vpop.permute.xlu0 %1758
      %1760 = vset.pattern.permute.xlu0 0
      %1761 = vperm.xlu0 %1760, %v1731
      %v1762 = vpop.permute.xlu0 %1761
      %1763 = vset.pattern.permute.xlu0 0
      %1764 = vperm.xlu0 %1763, %v1732
      %v1765 = vpop.permute.xlu0 %1764
      %1766 = vset.pattern.permute.xlu0 0
      %1767 = vperm.xlu0 %1766, %v1733
      %v1768 = vpop.permute.xlu0 %1767
      %1769 = vset.pattern.permute.xlu0 0
      %1770 = vperm.xlu0 %1769, %v1734
      %v1771 = vpop.permute.xlu0 %1770
      %1772 = vset.pattern.permute.xlu0 0
      %1773 = vperm.xlu0 %1772, %v1735
      %v1774 = vpop.permute.xlu0 %1773
      %1775 = vset.pattern.permute.xlu0 0
      %1776 = vperm.xlu0 %1775, %v1736
      %v1777 = vpop.permute.xlu0 %1776
      %1778 = vset.pattern.permute.xlu0 0
      %1779 = vperm.xlu0 %1778, %v1737
      %v1780 = vpop.permute.xlu0 %1779
      %1781 = vset.pattern.permute.xlu0 0
      %1782 = vperm.xlu0 %1781, %v1738
      %v1783 = vpop.permute.xlu0 %1782
      %1784 = vset.pattern.permute.xlu0 0
      %1785 = vperm.xlu0 %1784, %v1739
      %v1786 = vpop.permute.xlu0 %1785
      %1787 = vset.pattern.permute.xlu0 0
      %1788 = vperm.xlu0 %1787, %v1740
      %v1789 = vpop.permute.xlu0 %1788
      %v1790 = vlaneseq
      %v1791 = vshrl.u32 %v1790, 7
      %v1792 = vsub.s32 0, %v1791
      %v1793 = vrot.slane %v1741, %v1792
      %vm1794 = vcmp.eq.s32.totalorder %v1744, %v1793
      %vm1795 = vcmp.eq.s32.totalorder %v1747, %v1793
      %vm1796 = vcmp.eq.s32.totalorder %v1750, %v1793
      %vm1797 = vcmp.eq.s32.totalorder %v1753, %v1793
      %vm1798 = vcmp.eq.s32.totalorder %v1756, %v1793
      %vm1799 = vcmp.eq.s32.totalorder %v1759, %v1793
      %vm1800 = vcmp.eq.s32.totalorder %v1762, %v1793
      %vm1801 = vcmp.eq.s32.totalorder %v1765, %v1793
      %vm1802 = vcmp.eq.s32.totalorder %v1768, %v1793
      %vm1803 = vcmp.eq.s32.totalorder %v1771, %v1793
      %vm1804 = vcmp.eq.s32.totalorder %v1774, %v1793
      %vm1805 = vcmp.eq.s32.totalorder %v1777, %v1793
      %vm1806 = vcmp.eq.s32.totalorder %v1780, %v1793
      %vm1807 = vcmp.eq.s32.totalorder %v1783, %v1793
      %vm1808 = vcmp.eq.s32.totalorder %v1786, %v1793
      %vm1809 = vcmp.eq.s32.totalorder %v1789, %v1793
      %v1810 = vmul.f32 %v1632, 96.0
      %v1811 = vmul.f32 %v1638, 96.0
      %v1812 = vmul.f32 %v1644, 96.0
      %v1813 = vmul.f32 %v1650, 96.0
      %v1814 = vmul.f32 %v1656, 96.0
      %v1815 = vmul.f32 %v1662, 96.0
      %v1816 = vmul.f32 %v1668, 96.0
      %v1817 = vmul.f32 %v1674, 96.0
      %v1818 = vmul.f32 %v1680, 96.0
      %v1819 = vmul.f32 %v1686, 96.0
      %v1820 = vmul.f32 %v1692, 96.0
      %v1821 = vmul.f32 %v1698, 96.0
      %v1822 = vmul.f32 %v1704, 96.0
      %v1823 = vmul.f32 %v1710, 96.0
      %v1824 = vmul.f32 %v1716, 96.0
      %v1825 = vmul.f32 %v1722, 96.0
      %v1826 = vmul.f32 %v1810, %v1632
      %v1827 = vmul.f32 %v1811, %v1638
      %v1828 = vmul.f32 %v1812, %v1644
      %v1829 = vmul.f32 %v1813, %v1650
      %v1830 = vmul.f32 %v1814, %v1656
      %v1831 = vmul.f32 %v1815, %v1662
      %v1832 = vmul.f32 %v1816, %v1668
      %v1833 = vmul.f32 %v1817, %v1674
      %v1834 = vmul.f32 %v1818, %v1680
      %v1835 = vmul.f32 %v1819, %v1686
      %v1836 = vmul.f32 %v1820, %v1692
      %v1837 = vmul.f32 %v1821, %v1698
      %v1838 = vmul.f32 %v1822, %v1704
      %v1839 = vmul.f32 %v1823, %v1710
      %v1840 = vmul.f32 %v1824, %v1716
      %v1841 = vmul.f32 %v1825, %v1722
      %v1842 = vadd.f32 %v1810, %v1810
      %v1843 = vadd.f32 %v1811, %v1811
      %v1844 = vadd.f32 %v1812, %v1812
      %v1845 = vadd.f32 %v1813, %v1813
      %v1846 = vadd.f32 %v1814, %v1814
      %v1847 = vadd.f32 %v1815, %v1815
      %v1848 = vadd.f32 %v1816, %v1816
      %v1849 = vadd.f32 %v1817, %v1817
      %v1850 = vadd.f32 %v1818, %v1818
      %v1851 = vadd.f32 %v1819, %v1819
      %v1852 = vadd.f32 %v1820, %v1820
      %v1853 = vadd.f32 %v1821, %v1821
      %v1854 = vadd.f32 %v1822, %v1822
      %v1855 = vadd.f32 %v1823, %v1823
      %v1856 = vadd.f32 %v1824, %v1824
      %v1857 = vadd.f32 %v1825, %v1825
      %v1858 = vsub.f32 %v1842, %v1826
      %v1859 = vsub.f32 %v1843, %v1827
      %v1860 = vsub.f32 %v1844, %v1828
      %v1861 = vsub.f32 %v1845, %v1829
      %v1862 = vsub.f32 %v1846, %v1830
      %v1863 = vsub.f32 %v1847, %v1831
      %v1864 = vsub.f32 %v1848, %v1832
      %v1865 = vsub.f32 %v1849, %v1833
      %v1866 = vsub.f32 %v1850, %v1834
      %v1867 = vsub.f32 %v1851, %v1835
      %v1868 = vsub.f32 %v1852, %v1836
      %v1869 = vsub.f32 %v1853, %v1837
      %v1870 = vsub.f32 %v1854, %v1838
      %v1871 = vsub.f32 %v1855, %v1839
      %v1872 = vsub.f32 %v1856, %v1840
      %v1873 = vsub.f32 %v1857, %v1841
      %v1874 = vsub.f32 %v1858, 168.48
      %v1875 = vsub.f32 %v1859, 168.48
      %v1876 = vsub.f32 %v1860, 168.48
      %v1877 = vsub.f32 %v1861, 168.48
      %v1878 = vsub.f32 %v1862, 168.48
      %v1879 = vsub.f32 %v1863, 168.48
      %v1880 = vsub.f32 %v1864, 168.48
      %v1881 = vsub.f32 %v1865, 168.48
      %v1882 = vsub.f32 %v1866, 168.48
      %v1883 = vsub.f32 %v1867, 168.48
      %v1884 = vsub.f32 %v1868, 168.48
      %v1885 = vsub.f32 %v1869, 168.48
      %v1886 = vsub.f32 %v1870, 168.48
      %v1887 = vsub.f32 %v1871, 168.48
      %v1888 = vsub.f32 %v1872, 168.48
      %v1889 = vsub.f32 %v1873, 168.48
      %vm1890 = vcmp.gt.f32.partialorder %v1632, -0.35
      %vm1891 = vcmp.gt.f32.partialorder %v1638, -0.35
      %vm1892 = vcmp.gt.f32.partialorder %v1644, -0.35
      %vm1893 = vcmp.gt.f32.partialorder %v1650, -0.35
      %vm1894 = vcmp.gt.f32.partialorder %v1656, -0.35
      %vm1895 = vcmp.gt.f32.partialorder %v1662, -0.35
      %vm1896 = vcmp.gt.f32.partialorder %v1668, -0.35
      %vm1897 = vcmp.gt.f32.partialorder %v1674, -0.35
      %vm1898 = vcmp.gt.f32.partialorder %v1680, -0.35
      %vm1899 = vcmp.gt.f32.partialorder %v1686, -0.35
      %vm1900 = vcmp.gt.f32.partialorder %v1692, -0.35
      %vm1901 = vcmp.gt.f32.partialorder %v1698, -0.35
      %vm1902 = vcmp.gt.f32.partialorder %v1704, -0.35
      %vm1903 = vcmp.gt.f32.partialorder %v1710, -0.35
      %vm1904 = vcmp.gt.f32.partialorder %v1716, -0.35
      %vm1905 = vcmp.gt.f32.partialorder %v1722, -0.35
      %v1906 = vsub.f32 %v1826, 96.0
      %v1907 = vsub.f32 %v1827, 96.0
      %v1908 = vsub.f32 %v1828, 96.0
      %v1909 = vsub.f32 %v1829, 96.0
      %v1910 = vsub.f32 %v1830, 96.0
      %v1911 = vsub.f32 %v1831, 96.0
      %v1912 = vsub.f32 %v1832, 96.0
      %v1913 = vsub.f32 %v1833, 96.0
      %v1914 = vsub.f32 %v1834, 96.0
      %v1915 = vsub.f32 %v1835, 96.0
      %v1916 = vsub.f32 %v1836, 96.0
      %v1917 = vsub.f32 %v1837, 96.0
      %v1918 = vsub.f32 %v1838, 96.0
      %v1919 = vsub.f32 %v1839, 96.0
      %v1920 = vsub.f32 %v1840, 96.0
      %v1921 = vsub.f32 %v1841, 96.0
      %v1922 = vsel %vm1890, %v1906, -84.24
      %v1923 = vsel %vm1891, %v1907, -84.24
      %v1924 = vsel %vm1892, %v1908, -84.24
      %v1925 = vsel %vm1893, %v1909, -84.24
      %v1926 = vsel %vm1894, %v1910, -84.24
      %v1927 = vsel %vm1895, %v1911, -84.24
      %v1928 = vsel %vm1896, %v1912, -84.24
      %v1929 = vsel %vm1897, %v1913, -84.24
      %v1930 = vsel %vm1898, %v1914, -84.24
      %v1931 = vsel %vm1899, %v1915, -84.24
      %v1932 = vsel %vm1900, %v1916, -84.24
      %v1933 = vsel %vm1901, %v1917, -84.24
      %v1934 = vsel %vm1902, %v1918, -84.24
      %v1935 = vsel %vm1903, %v1919, -84.24
      %v1936 = vsel %vm1904, %v1920, -84.24
      %v1937 = vsel %vm1905, %v1921, -84.24
      %v1938 = vsel %vm1794, %v1874, %v1922
      %v1939 = vsel %vm1795, %v1875, %v1923
      %v1940 = vsel %vm1796, %v1876, %v1924
      %v1941 = vsel %vm1797, %v1877, %v1925
      %v1942 = vsel %vm1798, %v1878, %v1926
      %v1943 = vsel %vm1799, %v1879, %v1927
      %v1944 = vsel %vm1800, %v1880, %v1928
      %v1945 = vsel %vm1801, %v1881, %v1929
      %v1946 = vsel %vm1802, %v1882, %v1930
      %v1947 = vsel %vm1803, %v1883, %v1931
      %v1948 = vsel %vm1804, %v1884, %v1932
      %v1949 = vsel %vm1805, %v1885, %v1933
      %v1950 = vsel %vm1806, %v1886, %v1934
      %v1951 = vsel %vm1807, %v1887, %v1935
      %v1952 = vsel %vm1808, %v1888, %v1936
      %v1953 = vsel %vm1809, %v1889, %v1937
      %v1954 = vmul.f32 %v1938, 1.442695
      %v1955 = vpow.pop %v1954
      %v1956 = vmul.f32 %v1939, 1.442695
      %v1957 = vpow.pop %v1956
      %v1958 = vmul.f32 %v1940, 1.442695
      %v1959 = vpow.pop %v1958
      %v1960 = vmul.f32 %v1941, 1.442695
      %v1961 = vpow.pop %v1960
      %v1962 = vmul.f32 %v1942, 1.442695
      %v1963 = vpow.pop %v1962
      %v1964 = vmul.f32 %v1943, 1.442695
      %v1965 = vpow.pop %v1964
      %v1966 = vmul.f32 %v1944, 1.442695
      %v1967 = vpow.pop %v1966
      %v1968 = vmul.f32 %v1945, 1.442695
      %v1969 = vpow.pop %v1968
      %v1970 = vmul.f32 %v1946, 1.442695
      %v1971 = vpow.pop %v1970
      %v1972 = vmul.f32 %v1947, 1.442695
      %v1973 = vpow.pop %v1972
      %v1974 = vmul.f32 %v1948, 1.442695
      %v1975 = vpow.pop %v1974
      %v1976 = vmul.f32 %v1949, 1.442695
      %v1977 = vpow.pop %v1976
      %v1978 = vmul.f32 %v1950, 1.442695
      %v1979 = vpow.pop %v1978
      %v1980 = vmul.f32 %v1951, 1.442695
      %v1981 = vpow.pop %v1980
      %v1982 = vmul.f32 %v1952, 1.442695
      %v1983 = vpow.pop %v1982
      %v1984 = vmul.f32 %v1953, 1.442695
      %v1985 = vpow.pop %v1984
      %v1986 = vld [vmem:[#allocation2] sm:$0xff]
      %v1987 = vld [vmem:[#allocation2 + $0x8] sm:$0xff]
      %v1988 = vld [vmem:[#allocation2 + $0x10] sm:$0xff]
      %v1989 = vld [vmem:[#allocation2 + $0x18] sm:$0xff]
      %v1990 = vld [vmem:[#allocation2 + $0x20] sm:$0xff]
      %v1991 = vld [vmem:[#allocation2 + $0x28] sm:$0xff]
      %v1992 = vld [vmem:[#allocation2 + $0x30] sm:$0xff]
      %v1993 = vld [vmem:[#allocation2 + $0x38] sm:$0xff]
      %v1994 = vld [vmem:[#allocation2 + $0x40] sm:$0xff]
      %v1995 = vld [vmem:[#allocation2 + $0x48] sm:$0xff]
      %v1996 = vld [vmem:[#allocation2 + $0x50] sm:$0xff]
      %v1997 = vld [vmem:[#allocation2 + $0x58] sm:$0xff]
      %v1998 = vld [vmem:[#allocation2 + $0x60] sm:$0xff]
      %v1999 = vld [vmem:[#allocation2 + $0x68] sm:$0xff]
      %v2000 = vld [vmem:[#allocation2 + $0x70] sm:$0xff]
      %v2001 = vld [vmem:[#allocation2 + $0x78] sm:$0xff]
      %v2002 = vsel %vm1794, %v1955, 0.0
      %v2003 = vsel %vm1795, %v1957, 0.0
      %v2004 = vsel %vm1796, %v1959, 0.0
      %v2005 = vsel %vm1797, %v1961, 0.0
      %v2006 = vsel %vm1798, %v1963, 0.0
      %v2007 = vsel %vm1799, %v1965, 0.0
      %v2008 = vsel %vm1800, %v1967, 0.0
      %v2009 = vsel %vm1801, %v1969, 0.0
      %v2010 = vsel %vm1802, %v1971, 0.0
      %v2011 = vsel %vm1803, %v1973, 0.0
      %v2012 = vsel %vm1804, %v1975, 0.0
      %v2013 = vsel %vm1805, %v1977, 0.0
      %v2014 = vsel %vm1806, %v1979, 0.0
      %v2015 = vsel %vm1807, %v1981, 0.0
      %v2016 = vsel %vm1808, %v1983, 0.0
      %v2017 = vsel %vm1809, %v1985, 0.0
      %2018 = vadd.xlane.f32.xlu0 %v2002
      %v2019 = vpop.xlane.xlu0 %2018
      %2020 = vadd.xlane.f32.xlu0 %v2003
      %v2021 = vpop.xlane.xlu0 %2020
      %2022 = vadd.xlane.f32.xlu0 %v2004
      %v2023 = vpop.xlane.xlu0 %2022
      %2024 = vadd.xlane.f32.xlu0 %v2005
      %v2025 = vpop.xlane.xlu0 %2024
      %2026 = vadd.xlane.f32.xlu0 %v2006
      %v2027 = vpop.xlane.xlu0 %2026
      %2028 = vadd.xlane.f32.xlu0 %v2007
      %v2029 = vpop.xlane.xlu0 %2028
      %2030 = vadd.xlane.f32.xlu0 %v2008
      %v2031 = vpop.xlane.xlu0 %2030
      %2032 = vadd.xlane.f32.xlu0 %v2009
      %v2033 = vpop.xlane.xlu0 %2032
      %2034 = vadd.xlane.f32.xlu0 %v2010
      %v2035 = vpop.xlane.xlu0 %2034
      %2036 = vadd.xlane.f32.xlu0 %v2011
      %v2037 = vpop.xlane.xlu0 %2036
      %2038 = vadd.xlane.f32.xlu0 %v2012
      %v2039 = vpop.xlane.xlu0 %2038
      %2040 = vadd.xlane.f32.xlu0 %v2013
      %v2041 = vpop.xlane.xlu0 %2040
      %2042 = vadd.xlane.f32.xlu0 %v2014
      %v2043 = vpop.xlane.xlu0 %2042
      %2044 = vadd.xlane.f32.xlu0 %v2015
      %v2045 = vpop.xlane.xlu0 %2044
      %2046 = vadd.xlane.f32.xlu0 %v2016
      %v2047 = vpop.xlane.xlu0 %2046
      %2048 = vadd.xlane.f32.xlu0 %v2017
      %v2049 = vpop.xlane.xlu0 %2048
      %v2050 = vadd.f32 %v1986, %v2019
      %v2051 = vadd.f32 %v1987, %v2021
      %v2052 = vadd.f32 %v1988, %v2023
      %v2053 = vadd.f32 %v1989, %v2025
      %v2054 = vadd.f32 %v1990, %v2027
      %v2055 = vadd.f32 %v1991, %v2029
      %v2056 = vadd.f32 %v1992, %v2031
      %v2057 = vadd.f32 %v1993, %v2033
      %v2058 = vadd.f32 %v1994, %v2035
      %v2059 = vadd.f32 %v1995, %v2037
      %v2060 = vadd.f32 %v1996, %v2039
      %v2061 = vadd.f32 %v1997, %v2041
      %v2062 = vadd.f32 %v1998, %v2043
      %v2063 = vadd.f32 %v1999, %v2045
      %v2064 = vadd.f32 %v2000, %v2047
      %v2065 = vadd.f32 %v2001, %v2049
      %vm2066 = vcmask 7168
      %2067 = vst.msk [vmem:[#allocation2] sm:$0xff] %vm2066, %v2050
      %2068 = vst.msk [vmem:[#allocation2 + $0x8] sm:$0xff] %vm2066, %v2051
      %2069 = vst.msk [vmem:[#allocation2 + $0x10] sm:$0xff] %vm2066, %v2052
      %2070 = vst.msk [vmem:[#allocation2 + $0x18] sm:$0xff] %vm2066, %v2053
      %2071 = vst.msk [vmem:[#allocation2 + $0x20] sm:$0xff] %vm2066, %v2054
      %2072 = vst.msk [vmem:[#allocation2 + $0x28] sm:$0xff] %vm2066, %v2055
      %2073 = vst.msk [vmem:[#allocation2 + $0x30] sm:$0xff] %vm2066, %v2056
      %2074 = vst.msk [vmem:[#allocation2 + $0x38] sm:$0xff] %vm2066, %v2057
      %2075 = vst.msk [vmem:[#allocation2 + $0x40] sm:$0xff] %vm2066, %v2058
      %2076 = vst.msk [vmem:[#allocation2 + $0x48] sm:$0xff] %vm2066, %v2059
      %2077 = vst.msk [vmem:[#allocation2 + $0x50] sm:$0xff] %vm2066, %v2060
      %2078 = vst.msk [vmem:[#allocation2 + $0x58] sm:$0xff] %vm2066, %v2061
      %2079 = vst.msk [vmem:[#allocation2 + $0x60] sm:$0xff] %vm2066, %v2062
      %2080 = vst.msk [vmem:[#allocation2 + $0x68] sm:$0xff] %vm2066, %v2063
      %2081 = vst.msk [vmem:[#allocation2 + $0x70] sm:$0xff] %vm2066, %v2064
      %2082 = vst.msk [vmem:[#allocation2 + $0x78] sm:$0xff] %vm2066, %v2065
      %v2083 = vld [vmem:[#allocation3] sm:$0xff]
      %v2084 = vld [vmem:[#allocation3 + $0x8] sm:$0xff]
      %v2085 = vld [vmem:[#allocation3 + $0x10] sm:$0xff]
      %v2086 = vld [vmem:[#allocation3 + $0x18] sm:$0xff]
      %v2087 = vld [vmem:[#allocation3 + $0x20] sm:$0xff]
      %v2088 = vld [vmem:[#allocation3 + $0x28] sm:$0xff]
      %v2089 = vld [vmem:[#allocation3 + $0x30] sm:$0xff]
      %v2090 = vld [vmem:[#allocation3 + $0x38] sm:$0xff]
      %v2091 = vld [vmem:[#allocation3 + $0x40] sm:$0xff]
      %v2092 = vld [vmem:[#allocation3 + $0x48] sm:$0xff]
      %v2093 = vld [vmem:[#allocation3 + $0x50] sm:$0xff]
      %v2094 = vld [vmem:[#allocation3 + $0x58] sm:$0xff]
      %v2095 = vld [vmem:[#allocation3 + $0x60] sm:$0xff]
      %v2096 = vld [vmem:[#allocation3 + $0x68] sm:$0xff]
      %v2097 = vld [vmem:[#allocation3 + $0x70] sm:$0xff]
      %v2098 = vld [vmem:[#allocation3 + $0x78] sm:$0xff]
      %2099 = vadd.xlane.f32.xlu0 %v1955
      %v2100 = vpop.xlane.xlu0 %2099
      %2101 = vadd.xlane.f32.xlu0 %v1957
      %v2102 = vpop.xlane.xlu0 %2101
      %2103 = vadd.xlane.f32.xlu0 %v1959
      %v2104 = vpop.xlane.xlu0 %2103
      %2105 = vadd.xlane.f32.xlu0 %v1961
      %v2106 = vpop.xlane.xlu0 %2105
      %2107 = vadd.xlane.f32.xlu0 %v1963
      %v2108 = vpop.xlane.xlu0 %2107
      %2109 = vadd.xlane.f32.xlu0 %v1965
      %v2110 = vpop.xlane.xlu0 %2109
      %2111 = vadd.xlane.f32.xlu0 %v1967
      %v2112 = vpop.xlane.xlu0 %2111
      %2113 = vadd.xlane.f32.xlu0 %v1969
      %v2114 = vpop.xlane.xlu0 %2113
      %2115 = vadd.xlane.f32.xlu0 %v1971
      %v2116 = vpop.xlane.xlu0 %2115
      %2117 = vadd.xlane.f32.xlu0 %v1973
      %v2118 = vpop.xlane.xlu0 %2117
      %2119 = vadd.xlane.f32.xlu0 %v1975
      %v2120 = vpop.xlane.xlu0 %2119
      %2121 = vadd.xlane.f32.xlu0 %v1977
      %v2122 = vpop.xlane.xlu0 %2121
      %2123 = vadd.xlane.f32.xlu0 %v1979
      %v2124 = vpop.xlane.xlu0 %2123
      %2125 = vadd.xlane.f32.xlu0 %v1981
      %v2126 = vpop.xlane.xlu0 %2125
      %2127 = vadd.xlane.f32.xlu0 %v1983
      %v2128 = vpop.xlane.xlu0 %2127
      %2129 = vadd.xlane.f32.xlu0 %v1985
      %v2130 = vpop.xlane.xlu0 %2129
      %v2131 = vadd.f32 %v2083, %v2100
      %v2132 = vadd.f32 %v2084, %v2102
      %v2133 = vadd.f32 %v2085, %v2104
      %v2134 = vadd.f32 %v2086, %v2106
      %v2135 = vadd.f32 %v2087, %v2108
      %v2136 = vadd.f32 %v2088, %v2110
      %v2137 = vadd.f32 %v2089, %v2112
      %v2138 = vadd.f32 %v2090, %v2114
      %v2139 = vadd.f32 %v2091, %v2116
      %v2140 = vadd.f32 %v2092, %v2118
      %v2141 = vadd.f32 %v2093, %v2120
      %v2142 = vadd.f32 %v2094, %v2122
      %v2143 = vadd.f32 %v2095, %v2124
      %v2144 = vadd.f32 %v2096, %v2126
      %v2145 = vadd.f32 %v2097, %v2128
      %v2146 = vadd.f32 %v2098, %v2130
      %2147 = vst.msk [vmem:[#allocation3] sm:$0xff] %vm2066, %v2131
      %2148 = vst.msk [vmem:[#allocation3 + $0x8] sm:$0xff] %vm2066, %v2132
      %2149 = vst.msk [vmem:[#allocation3 + $0x10] sm:$0xff] %vm2066, %v2133
      %2150 = vst.msk [vmem:[#allocation3 + $0x18] sm:$0xff] %vm2066, %v2134
      %2151 = vst.msk [vmem:[#allocation3 + $0x20] sm:$0xff] %vm2066, %v2135
      %2152 = vst.msk [vmem:[#allocation3 + $0x28] sm:$0xff] %vm2066, %v2136
      %2153 = vst.msk [vmem:[#allocation3 + $0x30] sm:$0xff] %vm2066, %v2137
      %2154 = vst.msk [vmem:[#allocation3 + $0x38] sm:$0xff] %vm2066, %v2138
      %2155 = vst.msk [vmem:[#allocation3 + $0x40] sm:$0xff] %vm2066, %v2139
      %2156 = vst.msk [vmem:[#allocation3 + $0x48] sm:$0xff] %vm2066, %v2140
      %2157 = vst.msk [vmem:[#allocation3 + $0x50] sm:$0xff] %vm2066, %v2141
      %2158 = vst.msk [vmem:[#allocation3 + $0x58] sm:$0xff] %vm2066, %v2142
      %2159 = vst.msk [vmem:[#allocation3 + $0x60] sm:$0xff] %vm2066, %v2143
      %2160 = vst.msk [vmem:[#allocation3 + $0x68] sm:$0xff] %vm2066, %v2144
      %2161 = vst.msk [vmem:[#allocation3 + $0x70] sm:$0xff] %vm2066, %v2145
      %2162 = vst.msk [vmem:[#allocation3 + $0x78] sm:$0xff] %vm2066, %v2146
      %p2163 = scmp.eq.s32.totalorder %s22, 1
      // Predicated region
      $region41: #{tpu_custom_call.1} parent=35 // pred_check
        %p2164 = pneg %p2163
      $region42: #{tpu_custom_call.1} parent=35 // pred_check_branch
        %2166 = sbr.rel (%p2164) target = $region44
      $region43: #{tpu_custom_call.1} parent=35 // pred_region
        %v2167 = vld [vmem:[#allocation3] sm:$0xff]
        %v2168 = vld [vmem:[#allocation3 + $0x8] sm:$0xff]
        %v2169 = vld [vmem:[#allocation3 + $0x10] sm:$0xff]
        %v2170 = vld [vmem:[#allocation3 + $0x18] sm:$0xff]
        %v2171 = vld [vmem:[#allocation3 + $0x20] sm:$0xff]
        %v2172 = vld [vmem:[#allocation3 + $0x28] sm:$0xff]
        %v2173 = vld [vmem:[#allocation3 + $0x30] sm:$0xff]
        %v2174 = vld [vmem:[#allocation3 + $0x38] sm:$0xff]
        %v2175 = vld [vmem:[#allocation3 + $0x40] sm:$0xff]
        %v2176 = vld [vmem:[#allocation3 + $0x48] sm:$0xff]
        %v2177 = vld [vmem:[#allocation3 + $0x50] sm:$0xff]
        %v2178 = vld [vmem:[#allocation3 + $0x58] sm:$0xff]
        %v2179 = vld [vmem:[#allocation3 + $0x60] sm:$0xff]
        %v2180 = vld [vmem:[#allocation3 + $0x68] sm:$0xff]
        %v2181 = vld [vmem:[#allocation3 + $0x70] sm:$0xff]
        %v2182 = vld [vmem:[#allocation3 + $0x78] sm:$0xff]
        %v2183 = vlog2.pop %v2167
        %v2184 = vmul.f32 %v2183, 0.6931472
        %v2185 = vlog2.pop %v2168
        %v2186 = vmul.f32 %v2185, 0.6931472
        %v2187 = vlog2.pop %v2169
        %v2188 = vmul.f32 %v2187, 0.6931472
        %v2189 = vlog2.pop %v2170
        %v2190 = vmul.f32 %v2189, 0.6931472
        %v2191 = vlog2.pop %v2171
        %v2192 = vmul.f32 %v2191, 0.6931472
        %v2193 = vlog2.pop %v2172
        %v2194 = vmul.f32 %v2193, 0.6931472
        %v2195 = vlog2.pop %v2173
        %v2196 = vmul.f32 %v2195, 0.6931472
        %v2197 = vlog2.pop %v2174
        %v2198 = vmul.f32 %v2197, 0.6931472
        %v2199 = vlog2.pop %v2175
        %v2200 = vmul.f32 %v2199, 0.6931472
        %v2201 = vlog2.pop %v2176
        %v2202 = vmul.f32 %v2201, 0.6931472
        %v2203 = vlog2.pop %v2177
        %v2204 = vmul.f32 %v2203, 0.6931472
        %v2205 = vlog2.pop %v2178
        %v2206 = vmul.f32 %v2205, 0.6931472
        %v2207 = vlog2.pop %v2179
        %v2208 = vmul.f32 %v2207, 0.6931472
        %v2209 = vlog2.pop %v2180
        %v2210 = vmul.f32 %v2209, 0.6931472
        %v2211 = vlog2.pop %v2181
        %v2212 = vmul.f32 %v2211, 0.6931472
        %v2213 = vlog2.pop %v2182
        %v2214 = vmul.f32 %v2213, 0.6931472
        %v2215 = vld [vmem:[#allocation2] sm:$0xff]
        %v2216 = vld [vmem:[#allocation2 + $0x8] sm:$0xff]
        %v2217 = vld [vmem:[#allocation2 + $0x10] sm:$0xff]
        %v2218 = vld [vmem:[#allocation2 + $0x18] sm:$0xff]
        %v2219 = vld [vmem:[#allocation2 + $0x20] sm:$0xff]
        %v2220 = vld [vmem:[#allocation2 + $0x28] sm:$0xff]
        %v2221 = vld [vmem:[#allocation2 + $0x30] sm:$0xff]
        %v2222 = vld [vmem:[#allocation2 + $0x38] sm:$0xff]
        %v2223 = vld [vmem:[#allocation2 + $0x40] sm:$0xff]
        %v2224 = vld [vmem:[#allocation2 + $0x48] sm:$0xff]
        %v2225 = vld [vmem:[#allocation2 + $0x50] sm:$0xff]
        %v2226 = vld [vmem:[#allocation2 + $0x58] sm:$0xff]
        %v2227 = vld [vmem:[#allocation2 + $0x60] sm:$0xff]
        %v2228 = vld [vmem:[#allocation2 + $0x68] sm:$0xff]
        %v2229 = vld [vmem:[#allocation2 + $0x70] sm:$0xff]
        %v2230 = vld [vmem:[#allocation2 + $0x78] sm:$0xff]
        %v2231 = vlog2.pop %v2215
        %v2232 = vmul.f32 %v2231, 0.6931472
        %v2233 = vlog2.pop %v2216
        %v2234 = vmul.f32 %v2233, 0.6931472
        %v2235 = vlog2.pop %v2217
        %v2236 = vmul.f32 %v2235, 0.6931472
        %v2237 = vlog2.pop %v2218
        %v2238 = vmul.f32 %v2237, 0.6931472
        %v2239 = vlog2.pop %v2219
        %v2240 = vmul.f32 %v2239, 0.6931472
        %v2241 = vlog2.pop %v2220
        %v2242 = vmul.f32 %v2241, 0.6931472
        %v2243 = vlog2.pop %v2221
        %v2244 = vmul.f32 %v2243, 0.6931472
        %v2245 = vlog2.pop %v2222
        %v2246 = vmul.f32 %v2245, 0.6931472
        %v2247 = vlog2.pop %v2223
        %v2248 = vmul.f32 %v2247, 0.6931472
        %v2249 = vlog2.pop %v2224
        %v2250 = vmul.f32 %v2249, 0.6931472
        %v2251 = vlog2.pop %v2225
        %v2252 = vmul.f32 %v2251, 0.6931472
        %v2253 = vlog2.pop %v2226
        %v2254 = vmul.f32 %v2253, 0.6931472
        %v2255 = vlog2.pop %v2227
        %v2256 = vmul.f32 %v2255, 0.6931472
        %v2257 = vlog2.pop %v2228
        %v2258 = vmul.f32 %v2257, 0.6931472
        %v2259 = vlog2.pop %v2229
        %v2260 = vmul.f32 %v2259, 0.6931472
        %v2261 = vlog2.pop %v2230
        %v2262 = vmul.f32 %v2261, 0.6931472
        %v2263 = vsub.f32 %v2184, %v2232
        %v2264 = vsub.f32 %v2186, %v2234
        %v2265 = vsub.f32 %v2188, %v2236
        %v2266 = vsub.f32 %v2190, %v2238
        %v2267 = vsub.f32 %v2192, %v2240
        %v2268 = vsub.f32 %v2194, %v2242
        %v2269 = vsub.f32 %v2196, %v2244
        %v2270 = vsub.f32 %v2198, %v2246
        %v2271 = vsub.f32 %v2200, %v2248
        %v2272 = vsub.f32 %v2202, %v2250
        %v2273 = vsub.f32 %v2204, %v2252
        %v2274 = vsub.f32 %v2206, %v2254
        %v2275 = vsub.f32 %v2208, %v2256
        %v2276 = vsub.f32 %v2210, %v2258
        %v2277 = vsub.f32 %v2212, %v2260
        %v2278 = vsub.f32 %v2214, %v2262
        %2279 = vst.msk [vmem:[%s271] sm:$0xff] %vm2066, %v2263
        %2280 = vst.msk [vmem:[%s271 + $0x8] sm:$0xff] %vm2066, %v2264
        %2281 = vst.msk [vmem:[%s271 + $0x10] sm:$0xff] %vm2066, %v2265
        %2282 = vst.msk [vmem:[%s271 + $0x18] sm:$0xff] %vm2066, %v2266
        %2283 = vst.msk [vmem:[%s271 + $0x20] sm:$0xff] %vm2066, %v2267
        %2284 = vst.msk [vmem:[%s271 + $0x28] sm:$0xff] %vm2066, %v2268
        %2285 = vst.msk [vmem:[%s271 + $0x30] sm:$0xff] %vm2066, %v2269
        %2286 = vst.msk [vmem:[%s271 + $0x38] sm:$0xff] %vm2066, %v2270
        %2287 = vst.msk [vmem:[%s271 + $0x40] sm:$0xff] %vm2066, %v2271
        %2288 = vst.msk [vmem:[%s271 + $0x48] sm:$0xff] %vm2066, %v2272
        %2289 = vst.msk [vmem:[%s271 + $0x50] sm:$0xff] %vm2066, %v2273
        %2290 = vst.msk [vmem:[%s271 + $0x58] sm:$0xff] %vm2066, %v2274
        %2291 = vst.msk [vmem:[%s271 + $0x60] sm:$0xff] %vm2066, %v2275
        %2292 = vst.msk [vmem:[%s271 + $0x68] sm:$0xff] %vm2066, %v2276
        %2293 = vst.msk [vmem:[%s271 + $0x70] sm:$0xff] %vm2066, %v2277
        %2294 = vst.msk [vmem:[%s271 + $0x78] sm:$0xff] %vm2066, %v2278
      $region44: #{tpu_custom_call.1} parent=35 // pred_fallthru
        _
      %s2295 = smul.u32 16, %s21
      %p2296 = scmp.lt.s32.totalorder %s2295, 31
      %s2297 = scalar_select %p2296, %s2295, 31
      %s2298 = smul.addr %s2297, 8
      %s2299 = scalar_lea.vmem %s5, %s2298
      // Predicated region
      $region45: #{tpu_custom_call.1} parent=35 // pred_check
        %p2300 = pneg %p151
      $region46: #{tpu_custom_call.1} parent=35 // pred_check_branch
        %2302 = sbr.rel (%p2300) target = $region48
      $region47: #{tpu_custom_call.1} parent=35 // pred_region
        %s2303 = smul.u32 16, %s21
      $region48: #{tpu_custom_call.1} parent=35 // pred_fallthru
        _
    $region36: #{tpu_custom_call.1} parent=5 // pred_fallthru
      _
    %p2304 = scmp.le.s32.totalorder 2, %s12
    // Predicated region
    $region49: #{tpu_custom_call.1} parent=5 // pred_check
      %p2305 = pneg %p2304
    $region50: #{tpu_custom_call.1} parent=5 // pred_check_branch
      %2307 = sbr.rel (%p2305) target = $region52
    $region51: #{tpu_custom_call.1} parent=5 // pred_region
      %s2308 = ssub.s32 %s12, 2
      // Predicated region
      $region53: #{tpu_custom_call.1} parent=51 // pred_check
        %p2309 = pneg %p157
      $region54: #{tpu_custom_call.1} parent=51 // pred_check_branch
        %2311 = sbr.rel (%p2309) target = $region56
      $region55: #{tpu_custom_call.1} parent=51 // pred_region
        %s2312 = smul.u32 16, %s23
        %p2313 = scmp.lt.s32.totalorder %s2312, 31
        %s2314 = scalar_select %p2313, %s2312, 31
        %s2315 = smul.addr %s2314, 8
        %s2316 = scalar_lea.vmem %s5, %s2315
      $region56: #{tpu_custom_call.1} parent=51 // pred_fallthru
        _
    $region52: #{tpu_custom_call.1} parent=5 // pred_fallthru
      _
  $region6: #{tpu_custom_call.1} parent=0 // loop_footer
    %s16 = sadd.s32 1, %s12
  $region7: #{tpu_custom_call.1} parent=0 // loop_footer_branch
    %11 = sbr.rel target = $region3
  $region8: #{tpu_custom_call.1} parent=0 // loop_exit
    _

</llo_original>
